<compile_context>
chip_gen: v6e
topology: v6e:2x2x1
jax: 0.10.0
libtpu: 0.0.40
codegen_flags: <defaults>
</compile_context>

<pallas_src>
import math

import jax
import jax.numpy as jnp
from jax import lax
from jax.experimental import pallas as pl
from jax.experimental.pallas import tpu as pltpu


# --------------------------------------------------------------------------
# Fused kernel factory: Q/KV projections + head-batched scaled-dot attention
# --------------------------------------------------------------------------
def _make_kernel(num_heads, matmul_dtype, with_mask, with_probs):
    """Per grid step refs:
         text_ref  : (Bb, Lt, H)
         image_ref : (Bb, Li, H)
         wq_ref    : (H, H)   PyTorch (out,in) layout, scale pre-folded
         bq_ref    : (1, H)   f32, scale pre-folded
         wkv_ref   : (2H, H)  packed [Wk ; Wv], PyTorch layout
         bkv_ref   : (1, 2H)  f32
         mask_ref  : (Bb, 1, 1, Li)  additive mask (only when with_mask)
         o_ref     : (Bb, Lt, H)
         p_ref     : (Bb, nh, Lt, Li)  only when with_probs
    """

    def kernel(*refs):
        idx = 0
        text_ref = refs[idx]; idx += 1
        image_ref = refs[idx]; idx += 1
        wq_ref = refs[idx]; idx += 1
        bq_ref = refs[idx]; idx += 1
        wkv_ref = refs[idx]; idx += 1
        bkv_ref = refs[idx]; idx += 1
        mask_ref = None
        if with_mask:
            mask_ref = refs[idx]; idx += 1
        o_ref = refs[idx]; idx += 1
        p_ref = refs[idx] if with_probs else None

        Bb, Lt, H = text_ref.shape
        Li = image_ref.shape[1]
        nh = num_heads
        d = H // nh

        def mm(x):  # hoisted, one-shot cast for MXU operands
            return x if matmul_dtype is None else x.astype(matmul_dtype)

        # ---- fused projections (transposed-RHS feed, f32 accumulation) ----
        # Q: one (Bb*Lt, H) x (H, H) matmul; 1/sqrt(d) already folded into wq/bq.
        # KV: one wide (Bb*Li, H) x (H, 2H) matmul (packed Wk|Wv).
        text2d = mm(text_ref[...].reshape(Bb * Lt, H))
        image2d = mm(image_ref[...].reshape(Bb * Li, H))

        q2d = lax.dot_general(text2d, wq_ref[...],
                              dimension_numbers=(((1,), (1,)), ((), ())),
                              preferred_element_type=jnp.float32)
        q2d = q2d + bq_ref[...]

        kv2d = lax.dot_general(image2d, wkv_ref[...],
                               dimension_numbers=(((1,), (1,)), ((), ())),
                               preferred_element_type=jnp.float32)
        kv2d = kv2d + bkv_ref[...]
        k2d = kv2d[:, :H]
        v2d = kv2d[:, H:]

        # ---- split heads ONCE into a single (Bb*nh) batch dim ----
        q = mm(q2d).reshape(Bb, Lt, nh, d).transpose(0, 2, 1, 3).reshape(Bb * nh, Lt, d)
        k = mm(k2d).reshape(Bb, Li, nh, d).transpose(0, 2, 1, 3).reshape(Bb * nh, Li, d)
        v = mm(v2d).reshape(Bb, Li, nh, d).transpose(0, 2, 1, 3).reshape(Bb * nh, Li, d)

        # ---- one head-batched scores matmul ----
        s = jnp.einsum("bqd,bkd->bqk", q, k, preferred_element_type=jnp.float32)
        s = s.reshape(Bb, nh, Lt, Li)
        if with_mask:
            s = s + mask_ref[...]                      # (Bb,1,1,Li) broadcast, f32

        # ---- f32 softmax with exact denominator (probs rows sum to 1) ----
        m = jnp.max(s, axis=-1, keepdims=True)
        e = jnp.exp(s - m)
        p = e / jnp.sum(e, axis=-1, keepdims=True)
        # TODO(synk): nn.Dropout on attention probs is identity in eval mode.

        if with_probs:
            p_ref[...] = p.astype(p_ref.dtype)

        # ---- one head-batched probs @ V, then lane-dense head merge/store ----
        pb = mm(p).reshape(Bb * nh, Lt, Li)
        ctx = jnp.einsum("bqk,bkd->bqd", pb, v, preferred_element_type=jnp.float32)
        ctx = ctx.reshape(Bb, nh, Lt, d).transpose(0, 2, 1, 3).reshape(Bb, Lt, H)
        o_ref[...] = ctx.astype(o_ref.dtype)

    return kernel


# --------------------------------------------------------------------------
# Module-level wrapper (mirrors CrossAttention.forward)
# --------------------------------------------------------------------------
def cross_attention_forward(params, text_embeddings, image_embeddings, num_heads,
                            text_mask=None, image_mask=None,
                            output_attentions=False, matmul_dtype=None,
                            batch_block=None):
    """text_mask is accepted but unused, exactly like the reference PyTorch module."""
    del text_mask
    B, Lt, H = text_embeddings.shape
    Bi, Li, Hi = image_embeddings.shape
    assert B == Bi and H == Hi and H % num_heads == 0
    nh = num_heads
    d = H // nh
    scale = 1.0 / math.sqrt(d)

    # ---- host-side (free) weight prep: fold score scale into Q projection,
    #      pack K|V weights, pre-cast MXU operands ----
    wq = params["wq"] * scale                                           # (H, H)
    bq = (params["bq"] * scale).astype(jnp.float32).reshape(1, H)
    wkv = jnp.concatenate([params["wk"], params["wv"]], axis=0)         # (2H, H)
    bkv = jnp.concatenate([params["bk"], params["bv"]],
                          axis=0).astype(jnp.float32).reshape(1, 2 * H)
    if matmul_dtype is not None:
        wq = wq.astype(matmul_dtype)
        wkv = wkv.astype(matmul_dtype)

    with_mask = image_mask is not None
    if with_mask:
        image_mask = jnp.broadcast_to(jnp.asarray(image_mask, jnp.float32),
                                      (B, 1, 1, Li))

    # ---- batch rows per grid step: aim for >=128 query rows on the MXU ----
    if batch_block is None:
        batch_block = max(1, 128 // max(Lt, 1))
    bb = max(1, min(batch_block, B))
    while B % bb:
        bb -= 1
    nb = B // bb

    kernel = _make_kernel(num_heads=nh, matmul_dtype=matmul_dtype,
                          with_mask=with_mask, with_probs=output_attentions)

    def _resident(shape):
        # Grid-invariant operand: same block every step -> stays resident in VMEM.
        return pl.BlockSpec(shape, lambda i, _n=len(shape): (0,) * _n)

    in_specs = [
        pl.BlockSpec((bb, Lt, H), lambda i: (i, 0, 0)),        # text
        pl.BlockSpec((bb, Li, H), lambda i: (i, 0, 0)),        # image
        _resident((H, H)),                                     # wq (scaled)
        _resident((1, H)),                                     # bq (scaled)
        _resident((2 * H, H)),                                 # packed wk|wv
        _resident((1, 2 * H)),                                 # packed bk|bv
    ]
    inputs = [text_embeddings, image_embeddings, wq, bq, wkv, bkv]
    if with_mask:
        in_specs.append(pl.BlockSpec((bb, 1, 1, Li), lambda i: (i, 0, 0, 0)))
        inputs.append(image_mask)

    out_shape = [jax.ShapeDtypeStruct((B, Lt, H), text_embeddings.dtype)]
    out_specs = [pl.BlockSpec((bb, Lt, H), lambda i: (i, 0, 0))]
    if output_attentions:
        out_shape.append(jax.ShapeDtypeStruct((B, nh, Lt, Li), jnp.float32))
        out_specs.append(pl.BlockSpec((bb, nh, Lt, Li), lambda i: (i, 0, 0, 0)))

    # Advisory scheduler hint (item 10).
    flops = 2 * B * (Lt * H * H + Li * H * 2 * H + 2 * nh * Lt * Li * d)
    transcendentals = B * nh * Lt * Li
    bytes_accessed = (4 * (2 * B * Lt * H + B * Li * H)
                      + 4 * (3 * H * H + 3 * H)
                      + (4 * B * Li if with_mask else 0)
                      + (4 * B * nh * Lt * Li if output_attentions else 0))
    cost = pl.CostEstimate(flops=flops, transcendentals=transcendentals,
                           bytes_accessed=bytes_accessed)

    outs = pl.pallas_call(
        kernel,
        out_shape=out_shape,
        grid_spec=pltpu.PrefetchScalarGridSpec(
            num_scalar_prefetch=0,
            grid=(nb,),
            in_specs=in_specs,
            out_specs=out_specs,
        ),
        compiler_params=pltpu.CompilerParams(
            dimension_semantics=("parallel",),
            vmem_limit_bytes=48 * 1024 * 1024),
        cost_estimate=cost,
    )(*inputs)

    if output_attentions:
        return tuple(outs)          # (context, attention_probs)
    return (outs[0],)


# --------------------------------------------------------------------------
# Plain-JAX reference for verification
# --------------------------------------------------------------------------
def reference_forward(params, text, image, image_mask, num_heads):
    B, Lt, H = text.shape
    _, Li, _ = image.shape
    d = H // num_heads
    q = (text @ params["wq"].T + params["bq"]).reshape(B, Lt, num_heads, d).transpose(0, 2, 1, 3)
    k = (image @ params["wk"].T + params["bk"]).reshape(B, Li, num_heads, d).transpose(0, 2, 1, 3)
    v = (image @ params["wv"].T + params["bv"]).reshape(B, Li, num_heads, d).transpose(0, 2, 1, 3)
    scores = jnp.einsum("bhqd,bhkd->bhqk", q, k) / math.sqrt(d) + image_mask
    probs = jax.nn.softmax(scores, axis=-1)
    ctx = jnp.einsum("bhqk,bhkd->bhqd", probs, v)
    return ctx.transpose(0, 2, 1, 3).reshape(B, Lt, H), probs


if __name__ == "__main__":
    # Config consistent with the module: hidden=32, heads=4 -> head_dim=8
    B, Lt, Li, H, NH = 2, 8, 16, 32, 4

    key = jax.random.PRNGKey(0)
    k1, k2, k3, k4, k5, k6, k7, k8 = jax.random.split(key, 8)

    wscale = 1.0 / math.sqrt(H)
    params = {
        "wq": jax.random.normal(k1, (H, H), jnp.float32) * wscale,
        "bq": jax.random.normal(k2, (H,), jnp.float32) * 0.01,
        "wk": jax.random.normal(k3, (H, H), jnp.float32) * wscale,
        "bk": jax.random.normal(k4, (H,), jnp.float32) * 0.01,
        "wv": jax.random.normal(k5, (H, H), jnp.float32) * wscale,
        "bv": jax.random.normal(k6, (H,), jnp.float32) * 0.01,
    }

    text_embeddings = jax.random.normal(k7, (B, Lt, H), jnp.float32)
    image_embeddings = jax.random.normal(k8, (B, Li, H), jnp.float32)

    # Additive image mask: mask out the last 4 image tokens of batch 1.
    keep = jnp.ones((B, Li), jnp.float32).at[1, -4:].set(0.0)
    image_mask = ((1.0 - keep) * -1e9).reshape(B, 1, 1, Li)

    ref_ctx, ref_probs = reference_forward(params, text_embeddings,
                                           image_embeddings, image_mask, NH)

    # 1) Default path: attention probs are NOT materialized.
    (ctx,) = cross_attention_forward(params, text_embeddings, image_embeddings,
                                     NH, image_mask=image_mask)
    ctx = jax.block_until_ready(ctx)
    assert ctx.shape == (B, Lt, H)
    assert jnp.allclose(ctx, ref_ctx, atol=2e-3, rtol=2e-3), "context mismatch"

    # 2) output_attentions=True variant (probs emitted only when requested).
    ctx2, probs = cross_attention_forward(params, text_embeddings, image_embeddings,
                                          NH, image_mask=image_mask,
                                          output_attentions=True)
    probs = jax.block_until_ready(probs)
    assert probs.shape == (B, NH, Lt, Li)
    assert jnp.allclose(ctx2, ref_ctx, atol=2e-3, rtol=2e-3), "context mismatch (probs variant)"
    assert jnp.allclose(probs, ref_probs, atol=2e-3, rtol=2e-3), "probs mismatch"

    # 3) No-mask path (image_mask=None, like the module default).
    ref_ctx_nm, _ = reference_forward(params, text_embeddings, image_embeddings,
                                      jnp.zeros((B, 1, 1, Li), jnp.float32), NH)
    (ctx_nm,) = cross_attention_forward(params, text_embeddings, image_embeddings, NH)
    ctx_nm = jax.block_until_ready(ctx_nm)
    assert jnp.allclose(ctx_nm, ref_ctx_nm, atol=2e-3, rtol=2e-3), "no-mask mismatch"

    # 4) bf16 MXU-operand path (recommended on v6e/v7x; softmax stays f32).
    #    bf16 matmul operands introduce ~1e-2 relative error by design.
    (ctx_bf16,) = cross_attention_forward(params, text_embeddings, image_embeddings,
                                          NH, image_mask=image_mask,
                                          matmul_dtype=jnp.bfloat16)
    ctx_bf16 = jax.block_until_ready(ctx_bf16)
    assert jnp.allclose(ctx_bf16, ref_ctx, atol=5e-2, rtol=5e-2), "bf16 path mismatch"

    print("KERNEL_OK")
</pallas_src>

<mosaic_0001>
module attributes {stable_mosaic.version = 11 : i64} {
  func.func @kernel(%arg0: i32, %arg1: memref<2x8x32xf32, #tpu.memory_space<vmem>>, %arg2: memref<2x16x32xf32, #tpu.memory_space<vmem>>, %arg3: memref<32x32xf32, #tpu.memory_space<vmem>>, %arg4: memref<1x32xf32, #tpu.memory_space<vmem>>, %arg5: memref<64x32xf32, #tpu.memory_space<vmem>>, %arg6: memref<1x64xf32, #tpu.memory_space<vmem>>, %arg7: memref<2x1x1x16xf32, #tpu.memory_space<vmem>>, %arg8: memref<2x8x32xf32, #tpu.memory_space<vmem>>) attributes {dimension_semantics = [#tpu.dimension_semantics<parallel>], iteration_bounds = array<i64: 1>, scalar_prefetch = 0 : i64, scratch_operands = 0 : i64, tpu.core_type = #tpu.core_type<tc>, window_params = [{transform_indices = @transform_0, window_bounds = array<i64: 2, 8, 32>}, {transform_indices = @transform_1, window_bounds = array<i64: 2, 16, 32>}, {pipeline_mode = #tpu.pipeline_mode<synchronous>, transform_indices = @transform_2, window_bounds = array<i64: 32, 32>}, {pipeline_mode = #tpu.pipeline_mode<synchronous>, transform_indices = @transform_3, window_bounds = array<i64: 1, 32>}, {pipeline_mode = #tpu.pipeline_mode<synchronous>, transform_indices = @transform_4, window_bounds = array<i64: 64, 32>}, {pipeline_mode = #tpu.pipeline_mode<synchronous>, transform_indices = @transform_5, window_bounds = array<i64: 1, 64>}, {transform_indices = @transform_6, window_bounds = array<i64: 2, 1, 1, 16>}, {transform_indices = @transform_7, window_bounds = array<i64: 2, 8, 32>}]} {
    %c0 = arith.constant 0 : index
    %c0_0 = arith.constant 0 : index
    %c0_1 = arith.constant 0 : index
    %0 = vector.load %arg1[%c0, %c0_0, %c0_1] : memref<2x8x32xf32, #tpu.memory_space<vmem>>, vector<2x8x32xf32>
    %1 = vector.shape_cast %0 : vector<2x8x32xf32> to vector<16x32xf32>
    %c0_2 = arith.constant 0 : index
    %c0_3 = arith.constant 0 : index
    %c0_4 = arith.constant 0 : index
    %2 = vector.load %arg2[%c0_2, %c0_3, %c0_4] : memref<2x16x32xf32, #tpu.memory_space<vmem>>, vector<2x16x32xf32>
    %3 = vector.shape_cast %2 : vector<2x16x32xf32> to vector<32x32xf32>
    %c0_5 = arith.constant 0 : index
    %c0_6 = arith.constant 0 : index
    %4 = vector.load %arg3[%c0_5, %c0_6] : memref<32x32xf32, #tpu.memory_space<vmem>>, vector<32x32xf32>
    %cst = arith.constant dense<0.000000e+00> : vector<16x32xf32>
    %5 = tpu.matmul %1, %4, %cst {dimension_numbers = #tpu.dot_dimension_numbers<[1], [1], [0], [0], [0, 0, 1, 0], [], []>} : vector<16x32xf32>, vector<32x32xf32>, vector<16x32xf32> -> vector<16x32xf32>
    %c0_7 = arith.constant 0 : index
    %c0_8 = arith.constant 0 : index
    %6 = vector.load %arg4[%c0_7, %c0_8] : memref<1x32xf32, #tpu.memory_space<vmem>>, vector<1x32xf32>
    %7 = vector.broadcast %6 : vector<1x32xf32> to vector<16x32xf32>
    %8 = arith.addf %5, %7 : vector<16x32xf32>
    %c0_9 = arith.constant 0 : index
    %c0_10 = arith.constant 0 : index
    %9 = vector.load %arg5[%c0_9, %c0_10] : memref<64x32xf32, #tpu.memory_space<vmem>>, vector<64x32xf32>
    %cst_11 = arith.constant dense<0.000000e+00> : vector<32x64xf32>
    %10 = tpu.matmul %3, %9, %cst_11 {dimension_numbers = #tpu.dot_dimension_numbers<[1], [1], [0], [0], [0, 0, 1, 0], [], []>} : vector<32x32xf32>, vector<64x32xf32>, vector<32x64xf32> -> vector<32x64xf32>
    %c0_12 = arith.constant 0 : index
    %c0_13 = arith.constant 0 : index
    %11 = vector.load %arg6[%c0_12, %c0_13] : memref<1x64xf32, #tpu.memory_space<vmem>>, vector<1x64xf32>
    %12 = vector.broadcast %11 : vector<1x64xf32> to vector<32x64xf32>
    %13 = arith.addf %10, %12 : vector<32x64xf32>
    %14 = vector.extract_strided_slice %13 {offsets = [0, 0], sizes = [32, 32], strides = [1, 1]} : vector<32x64xf32> to vector<32x32xf32>
    %15 = vector.extract_strided_slice %13 {offsets = [0, 32], sizes = [32, 32], strides = [1, 1]} : vector<32x64xf32> to vector<32x32xf32>
    %16 = vector.shape_cast %8 : vector<16x32xf32> to vector<2x8x4x8xf32>
    %17 = tpu.transpose %16, [0, 2, 1, 3] : vector<2x8x4x8xf32> -> vector<2x4x8x8xf32>
    %18 = vector.shape_cast %17 : vector<2x4x8x8xf32> to vector<8x8x8xf32>
    %19 = vector.shape_cast %14 : vector<32x32xf32> to vector<2x16x4x8xf32>
    %20 = tpu.transpose %19, [0, 2, 1, 3] : vector<2x16x4x8xf32> -> vector<2x4x16x8xf32>
    %21 = vector.shape_cast %20 : vector<2x4x16x8xf32> to vector<8x16x8xf32>
    %22 = vector.shape_cast %15 : vector<32x32xf32> to vector<2x16x4x8xf32>
    %23 = tpu.transpose %22, [0, 2, 1, 3] : vector<2x16x4x8xf32> -> vector<2x4x16x8xf32>
    %24 = vector.shape_cast %23 : vector<2x4x16x8xf32> to vector<8x16x8xf32>
    "tpu.trace_start"() <{level = 10 : i32, message = "bqd,bkd->bqk"}> : () -> ()
    %cst_14 = arith.constant dense<0.000000e+00> : vector<8x8x16xf32>
    %25 = tpu.matmul %18, %21, %cst_14 {dimension_numbers = #tpu.dot_dimension_numbers<[2], [2], [1], [1], [0, 0, 0, 1, 1, 1], [0], [0]>} : vector<8x8x8xf32>, vector<8x16x8xf32>, vector<8x8x16xf32> -> vector<8x8x16xf32>
    "tpu.trace_stop"() : () -> ()
    %26 = vector.shape_cast %25 : vector<8x8x16xf32> to vector<2x4x8x16xf32>
    %c0_15 = arith.constant 0 : index
    %c0_16 = arith.constant 0 : index
    %c0_17 = arith.constant 0 : index
    %c0_18 = arith.constant 0 : index
    %27 = vector.load %arg7[%c0_15, %c0_16, %c0_17, %c0_18] : memref<2x1x1x16xf32, #tpu.memory_space<vmem>>, vector<2x1x1x16xf32>
    %28 = vector.broadcast %27 : vector<2x1x1x16xf32> to vector<2x4x8x16xf32>
    %29 = arith.addf %26, %28 : vector<2x4x8x16xf32>
    %cst_19 = arith.constant dense<0xFF800000> : vector<2x4x8xf32>
    %30 = vector.multi_reduction <maximumf>, %29, %cst_19 [3] : vector<2x4x8x16xf32> to vector<2x4x8xf32>
    %31 = vector.shape_cast %30 : vector<2x4x8xf32> to vector<2x4x8x1xf32>
    %32 = vector.broadcast %31 : vector<2x4x8x1xf32> to vector<2x4x8x16xf32>
    %33 = arith.subf %29, %32 : vector<2x4x8x16xf32>
    %34 = math.exp %33 : vector<2x4x8x16xf32>
    %cst_20 = arith.constant dense<0.000000e+00> : vector<2x4x8xf32>
    %35 = vector.multi_reduction <add>, %34, %cst_20 [3] : vector<2x4x8x16xf32> to vector<2x4x8xf32>
    %36 = vector.shape_cast %35 : vector<2x4x8xf32> to vector<2x4x8x1xf32>
    %37 = vector.broadcast %36 : vector<2x4x8x1xf32> to vector<2x4x8x16xf32>
    %38 = arith.divf %34, %37 : vector<2x4x8x16xf32>
    %39 = vector.shape_cast %38 : vector<2x4x8x16xf32> to vector<8x8x16xf32>
    "tpu.trace_start"() <{level = 10 : i32, message = "bqk,bkd->bqd"}> : () -> ()
    %cst_21 = arith.constant dense<0.000000e+00> : vector<8x8x8xf32>
    %40 = tpu.matmul %39, %24, %cst_21 {dimension_numbers = #tpu.dot_dimension_numbers<[2], [1], [1], [2], [0, 0, 0, 1, 1, 2], [0], [0]>} : vector<8x8x16xf32>, vector<8x16x8xf32>, vector<8x8x8xf32> -> vector<8x8x8xf32>
    "tpu.trace_stop"() : () -> ()
    %41 = vector.shape_cast %40 : vector<8x8x8xf32> to vector<2x4x8x8xf32>
    %42 = tpu.transpose %41, [0, 2, 1, 3] : vector<2x4x8x8xf32> -> vector<2x8x4x8xf32>
    %43 = vector.shape_cast %42 : vector<2x8x4x8xf32> to vector<2x8x32xf32>
    %c0_22 = arith.constant 0 : index
    %c0_23 = arith.constant 0 : index
    %c0_24 = arith.constant 0 : index
    %44 = vector.load %arg8[%c0_22, %c0_23, %c0_24] : memref<2x8x32xf32, #tpu.memory_space<vmem>>, vector<2x8x32xf32>
    tpu.vector_store %arg8[%c0_22, %c0_23, %c0_24], %43 {strides = array<i32>} : memref<2x8x32xf32, #tpu.memory_space<vmem>>, vector<2x8x32xf32>,
    return
  }
  func.func @transform_0(%arg0: i32) -> (i32, i32, i32) {
    %c0_i32 = arith.constant 0 : i32
    %c0_i32_0 = arith.constant 0 : i32
    %c0_i32_1 = arith.constant 0 : i32
    return %arg0, %c0_i32, %c0_i32_0 : i32, i32, i32
  }
  func.func @transform_1(%arg0: i32) -> (i32, i32, i32) {
    %c0_i32 = arith.constant 0 : i32
    %c0_i32_0 = arith.constant 0 : i32
    %c0_i32_1 = arith.constant 0 : i32
    return %arg0, %c0_i32, %c0_i32_0 : i32, i32, i32
  }
  func.func @transform_2(%arg0: i32) -> (i32, i32) {
    %c0_i32 = arith.constant 0 : i32
    %c0_i32_0 = arith.constant 0 : i32
    %c0_i32_1 = arith.constant 0 : i32
    return %c0_i32, %c0_i32_0 : i32, i32
  }
  func.func @transform_3(%arg0: i32) -> (i32, i32) {
    %c0_i32 = arith.constant 0 : i32
    %c0_i32_0 = arith.constant 0 : i32
    %c0_i32_1 = arith.constant 0 : i32
    return %c0_i32, %c0_i32_0 : i32, i32
  }
  func.func @transform_4(%arg0: i32) -> (i32, i32) {
    %c0_i32 = arith.constant 0 : i32
    %c0_i32_0 = arith.constant 0 : i32
    %c0_i32_1 = arith.constant 0 : i32
    return %c0_i32, %c0_i32_0 : i32, i32
  }
  func.func @transform_5(%arg0: i32) -> (i32, i32) {
    %c0_i32 = arith.constant 0 : i32
    %c0_i32_0 = arith.constant 0 : i32
    %c0_i32_1 = arith.constant 0 : i32
    return %c0_i32, %c0_i32_0 : i32, i32
  }
  func.func @transform_6(%arg0: i32) -> (i32, i32, i32, i32) {
    %c0_i32 = arith.constant 0 : i32
    %c0_i32_0 = arith.constant 0 : i32
    %c0_i32_1 = arith.constant 0 : i32
    %c0_i32_2 = arith.constant 0 : i32
    return %arg0, %c0_i32, %c0_i32_0, %c0_i32_1 : i32, i32, i32, i32
  }
  func.func @transform_7(%arg0: i32) -> (i32, i32, i32) {
    %c0_i32 = arith.constant 0 : i32
    %c0_i32_0 = arith.constant 0 : i32
    %c0_i32_1 = arith.constant 0 : i32
    return %arg0, %c0_i32, %c0_i32_0 : i32, i32, i32
  }
}

</mosaic_0001>

<llo_original>
// kernel: tpu_custom_call.1
$region0: #{tpu_custom_call.1}
  #allocation0 [shape = 'u32[]', space=smem, size = 0x4, offset = 0x4, fixed_abs, tag = 'smem constant byte address 0x4 - core index']
  #allocation1 [shape = 'u32[144,128]{1,0:T(1,128)}', space=vmem, size = 0x12000, scoped, tag = 'internal scratch']
  %s0 = inlined_call_operand.vmem [shape: f32[2,8,32], index: 0, kind: input, shape index: {}]
  %s1 = inlined_call_operand.vmem [shape: f32[2,16,32], index: 1, kind: input, shape index: {}]
  %s2 = inlined_call_operand.vmem [shape: f32[32,32], index: 2, kind: input, shape index: {}]
  %s3 = inlined_call_operand.vmem [shape: f32[1,32], index: 3, kind: input, shape index: {}]
  %s4 = inlined_call_operand.vmem [shape: f32[64,32], index: 4, kind: input, shape index: {}]
  %s5 = inlined_call_operand.vmem [shape: f32[1,64], index: 5, kind: input, shape index: {}]
  %s6 = inlined_call_operand.vmem [shape: f32[2,1,1,16], index: 6, kind: input, shape index: {}]
  %s7 = inlined_call_operand.hbm [shape: f32[2,8,32], index: 7, kind: output, shape index: {}]
  %s8 = sld [smem:[#allocation0]]
  $region38: #{tpu_custom_call.1} parent=0
    _
  %s10 = ssub.s32 1, %s8
  %s11 = scalar_select 0, %s10, %s8
  $region1: #{tpu_custom_call.1} parent=0
    #allocation2 [shape = 'u8[8192]{0}', space=vmem, size = 0x2000, scoped, tag = 'output window, operand 0, single buffered']
    #allocation3 [shape = 's32[1]{0}', space=sflag, size = 0x4, scoped, tag = 'scoped memory for tpu_custom_call.1']
    %12 = vsyncpa [#allocation3], 0
    // Predicated region
    $region2: #{tpu_custom_call.1} parent=1 // pred_check
      _
    $region3: #{tpu_custom_call.1} parent=1 // pred_check_branch
      %14 = sbr.rel (0) target = $region5
    $region4: #{tpu_custom_call.1} parent=1 // pred_region
      _
    $region5: #{tpu_custom_call.1} parent=1 // pred_fallthru
      _
    // Predicated region
    $region6: #{tpu_custom_call.1} parent=1 // pred_check
      _
    $region7: #{tpu_custom_call.1} parent=1 // pred_check_branch
      %16 = sbr.rel (0) target = $region9
    $region8: #{tpu_custom_call.1} parent=1 // pred_region
      _
    $region9: #{tpu_custom_call.1} parent=1 // pred_fallthru
      _
    // Predicated region
    $region10: #{tpu_custom_call.1} parent=1 // pred_check
      _
    $region11: #{tpu_custom_call.1} parent=1 // pred_check_branch
      %18 = sbr.rel (0) target = $region13
    $region12: #{tpu_custom_call.1} parent=1 // pred_region
      _
    $region13: #{tpu_custom_call.1} parent=1 // pred_fallthru
      _
    // Predicated region
    $region14: #{tpu_custom_call.1} parent=1 // pred_check
      _
    $region15: #{tpu_custom_call.1} parent=1 // pred_check_branch
      %20 = sbr.rel (0) target = $region17
    $region16: #{tpu_custom_call.1} parent=1 // pred_region
      _
    $region17: #{tpu_custom_call.1} parent=1 // pred_fallthru
      _
    // Predicated region
    $region18: #{tpu_custom_call.1} parent=1 // pred_check
      _
    $region19: #{tpu_custom_call.1} parent=1 // pred_check_branch
      %22 = sbr.rel (0) target = $region21
    $region20: #{tpu_custom_call.1} parent=1 // pred_region
      _
    $region21: #{tpu_custom_call.1} parent=1 // pred_fallthru
      _
    // Predicated region
    $region22: #{tpu_custom_call.1} parent=1 // pred_check
      _
    $region23: #{tpu_custom_call.1} parent=1 // pred_check_branch
      %24 = sbr.rel (0) target = $region25
    $region24: #{tpu_custom_call.1} parent=1 // pred_region
      _
    $region25: #{tpu_custom_call.1} parent=1 // pred_fallthru
      _
    // Predicated region
    $region26: #{tpu_custom_call.1} parent=1 // pred_check
      _
    $region27: #{tpu_custom_call.1} parent=1 // pred_check_branch
      %26 = sbr.rel (0) target = $region29
    $region28: #{tpu_custom_call.1} parent=1 // pred_region
      _
    $region29: #{tpu_custom_call.1} parent=1 // pred_fallthru
      _
    %v27 = vld [vmem:[%s0] sm:$0xff]
    %v28 = vld [vmem:[%s0 + $0x8] sm:$0xff]
    %v29 = vld [vmem:[%s1] sm:$0xff]
    %v30 = vld [vmem:[%s1 + $0x8] sm:$0xff]
    %v31 = vld [vmem:[%s1 + $0x10] sm:$0xff]
    %v32 = vld [vmem:[%s1 + $0x18] sm:$0xff]
    %v33 = vld [vmem:[%s2] sm:$0xff]
    %v34 = vld [vmem:[%s2 + $0x8] sm:$0xff]
    %v35 = vld [vmem:[%s2 + $0x10] sm:$0xff]
    %v36 = vld [vmem:[%s2 + $0x18] sm:$0xff]
    %v37 = vld [vmem:[%s3] sm:$0x1]
    %v39 = vlaneseq
    %v40 = vshrl.u32 %v39, 7
    %v41 = vsub.s32 0, %v40
    %v42 = vrot.slane %v37, %v41
    %vm44 = vcmask 261120
    %v46 = vsel %vm44, %v27, 0
    %v49 = vsel %vm44, %v28, 0
    %v52 = vsel %vm44, %v33, 0
    %v55 = vsel %vm44, %v34, 0
    %v58 = vsel %vm44, %v35, 0
    %v61 = vsel %vm44, %v36, 0
    %63 = vmatprep.subr.mxu0 0.0
    %64 = vmatpush1.xpose.msra.mxu0 0.0
    %65 = vmatprep.subr.mxu0 0.0
    %66 = vmatpush1.xpose.msra.mxu0 0.0
    %67 = vmatprep.subr.mxu0 0.0
    %68 = vmatpush1.xpose.msra.mxu0 0.0
    %69 = vmatprep.subr.mxu0 0.0
    %70 = vmatpush1.xpose.msra.mxu0 0.0
    %71 = vmatprep.subr.mxu0 0.0
    %72 = vmatpush1.xpose.msra.mxu0 0.0
    %73 = vmatprep.subr.mxu0 0.0
    %74 = vmatpush1.xpose.msra.mxu0 0.0
    %75 = vmatprep.subr.mxu0 0.0
    %76 = vmatpush1.xpose.msra.mxu0 0.0
    %77 = vmatprep.subr.mxu0 0.0
    %78 = vmatpush1.xpose.msra.mxu0 0.0
    %79 = vmatprep.subr.mxu0 0.0
    %80 = vmatpush1.xpose.msra.mxu0 0.0
    %81 = vmatprep.subr.mxu0 0.0
    %82 = vmatpush1.xpose.msra.mxu0 0.0
    %83 = vmatprep.subr.mxu0 0.0
    %84 = vmatpush1.xpose.msra.mxu0 0.0
    %85 = vmatprep.subr.mxu0 0.0
    %86 = vmatpush1.xpose.msra.mxu0 0.0
    %87 = vmatprep.subr.mxu0 0.0
    %88 = vmatpush1.xpose.msra.mxu0 %v61
    %89 = vmatprep.subr.mxu0 0.0
    %90 = vmatpush1.xpose.msra.mxu0 %v58
    %91 = vmatprep.subr.mxu0 0.0
    %92 = vmatpush1.xpose.msra.mxu0 %v55
    %93 = vmatprep.subr.mxu0 0.0
    %94 = vmatpush1.xpose.msra.mxu0 %v52
    %95 = vmatprep.subr.mxu0 0.0
    %96 = vmatpush2.xpose.msra.mxu0 0.0
    %97 = vmatprep.subr.mxu0 0.0
    %98 = vmatpush2.xpose.msra.mxu0 0.0
    %99 = vmatprep.subr.mxu0 0.0
    %100 = vmatpush2.xpose.msra.mxu0 0.0
    %101 = vmatprep.subr.mxu0 0.0
    %102 = vmatpush2.xpose.msra.mxu0 0.0
    %103 = vmatprep.subr.mxu0 0.0
    %104 = vmatpush2.xpose.msra.mxu0 0.0
    %105 = vmatprep.subr.mxu0 0.0
    %106 = vmatpush2.xpose.msra.mxu0 0.0
    %107 = vmatprep.subr.mxu0 0.0
    %108 = vmatpush2.xpose.msra.mxu0 0.0
    %109 = vmatprep.subr.mxu0 0.0
    %110 = vmatpush2.xpose.msra.mxu0 0.0
    %111 = vmatprep.subr.mxu0 0.0
    %112 = vmatpush2.xpose.msra.mxu0 0.0
    %113 = vmatprep.subr.mxu0 0.0
    %114 = vmatpush2.xpose.msra.mxu0 0.0
    %115 = vmatprep.subr.mxu0 0.0
    %116 = vmatpush2.xpose.msra.mxu0 0.0
    %117 = vmatprep.subr.mxu0 0.0
    %118 = vmatpush2.xpose.msra.mxu0 0.0
    %119 = vmatprep.subr.mxu0 0.0
    %120 = vmatpush2.xpose.msra.mxu0 0.0
    %121 = vmatprep.subr.mxu0 0.0
    %122 = vmatpush2.xpose.msra.mxu0 0.0
    %123 = vmatprep.subr.mxu0 0.0
    %124 = vmatpush2.xpose.msra.mxu0 0.0
    %125 = vmatprep.subr.mxu0 0.0
    %126 = vmatpush2.xpose.msra.mxu0 0.0
    %127 = vmatprep.mubr.f32.mxu0 0.0
    %128 = vmatmul.mubr.f32.gmra.mxu0 %v46
    %v129 = vpop.f32.mrf.mxu0
    %v130 = vadd.f32 %v42, %v129
    %v131 = vpop.f32.mrf.mxu0
    %132 = vmatprep.mubr.f32.mxu0 0.0
    %133 = vmatmul.mubr.f32.gmra.mxu0 %v49
    %v134 = vpop.f32.mrf.mxu0
    %v135 = vadd.f32 %v42, %v134
    %v136 = vpop.f32.mrf.mxu0
    %137 = vdwg.mxu0
    %v138 = vld [vmem:[%s4] sm:$0xff]
    %v139 = vld [vmem:[%s4 + $0x8] sm:$0xff]
    %v140 = vld [vmem:[%s4 + $0x10] sm:$0xff]
    %v141 = vld [vmem:[%s4 + $0x18] sm:$0xff]
    %v142 = vld [vmem:[%s4 + $0x20] sm:$0xff]
    %v143 = vld [vmem:[%s4 + $0x28] sm:$0xff]
    %v144 = vld [vmem:[%s4 + $0x30] sm:$0xff]
    %v145 = vld [vmem:[%s4 + $0x38] sm:$0xff]
    %v146 = vld [vmem:[%s5] sm:$0x1]
    %v148 = vlaneseq
    %v149 = vshrl.u32 %v148, 7
    %v150 = vsub.s32 0, %v149
    %v151 = vrot.slane %v146, %v150
    %v154 = vsel %vm44, %v29, 0
    %v157 = vsel %vm44, %v30, 0
    %v160 = vsel %vm44, %v31, 0
    %v163 = vsel %vm44, %v32, 0
    %v166 = vsel %vm44, %v138, 0
    %v169 = vsel %vm44, %v139, 0
    %v172 = vsel %vm44, %v140, 0
    %v175 = vsel %vm44, %v141, 0
    %v178 = vsel %vm44, %v142, 0
    %v181 = vsel %vm44, %v143, 0
    %v184 = vsel %vm44, %v144, 0
    %v187 = vsel %vm44, %v145, 0
    %189 = vmatprep.subr.mxu0 0.0
    %190 = vmatpush1.xpose.msra.mxu0 0.0
    %191 = vmatprep.subr.mxu0 0.0
    %192 = vmatpush1.xpose.msra.mxu0 0.0
    %193 = vmatprep.subr.mxu0 0.0
    %194 = vmatpush1.xpose.msra.mxu0 0.0
    %195 = vmatprep.subr.mxu0 0.0
    %196 = vmatpush1.xpose.msra.mxu0 0.0
    %197 = vmatprep.subr.mxu0 0.0
    %198 = vmatpush1.xpose.msra.mxu0 0.0
    %199 = vmatprep.subr.mxu0 0.0
    %200 = vmatpush1.xpose.msra.mxu0 0.0
    %201 = vmatprep.subr.mxu0 0.0
    %202 = vmatpush1.xpose.msra.mxu0 0.0
    %203 = vmatprep.subr.mxu0 0.0
    %204 = vmatpush1.xpose.msra.mxu0 0.0
    %205 = vmatprep.subr.mxu0 0.0
    %206 = vmatpush1.xpose.msra.mxu0 %v187
    %207 = vmatprep.subr.mxu0 0.0
    %208 = vmatpush1.xpose.msra.mxu0 %v184
    %209 = vmatprep.subr.mxu0 0.0
    %210 = vmatpush1.xpose.msra.mxu0 %v181
    %211 = vmatprep.subr.mxu0 0.0
    %212 = vmatpush1.xpose.msra.mxu0 %v178
    %213 = vmatprep.subr.mxu0 0.0
    %214 = vmatpush1.xpose.msra.mxu0 %v175
    %215 = vmatprep.subr.mxu0 0.0
    %216 = vmatpush1.xpose.msra.mxu0 %v172
    %217 = vmatprep.subr.mxu0 0.0
    %218 = vmatpush1.xpose.msra.mxu0 %v169
    %219 = vmatprep.subr.mxu0 0.0
    %220 = vmatpush1.xpose.msra.mxu0 %v166
    %221 = vmatprep.subr.mxu0 0.0
    %222 = vmatpush2.xpose.msra.mxu0 0.0
    %223 = vmatprep.subr.mxu0 0.0
    %224 = vmatpush2.xpose.msra.mxu0 0.0
    %225 = vmatprep.subr.mxu0 0.0
    %226 = vmatpush2.xpose.msra.mxu0 0.0
    %227 = vmatprep.subr.mxu0 0.0
    %228 = vmatpush2.xpose.msra.mxu0 0.0
    %229 = vmatprep.subr.mxu0 0.0
    %230 = vmatpush2.xpose.msra.mxu0 0.0
    %231 = vmatprep.subr.mxu0 0.0
    %232 = vmatpush2.xpose.msra.mxu0 0.0
    %233 = vmatprep.subr.mxu0 0.0
    %234 = vmatpush2.xpose.msra.mxu0 0.0
    %235 = vmatprep.subr.mxu0 0.0
    %236 = vmatpush2.xpose.msra.mxu0 0.0
    %237 = vmatprep.subr.mxu0 0.0
    %238 = vmatpush2.xpose.msra.mxu0 0.0
    %239 = vmatprep.subr.mxu0 0.0
    %240 = vmatpush2.xpose.msra.mxu0 0.0
    %241 = vmatprep.subr.mxu0 0.0
    %242 = vmatpush2.xpose.msra.mxu0 0.0
    %243 = vmatprep.subr.mxu0 0.0
    %244 = vmatpush2.xpose.msra.mxu0 0.0
    %245 = vmatprep.subr.mxu0 0.0
    %246 = vmatpush2.xpose.msra.mxu0 0.0
    %247 = vmatprep.subr.mxu0 0.0
    %248 = vmatpush2.xpose.msra.mxu0 0.0
    %249 = vmatprep.subr.mxu0 0.0
    %250 = vmatpush2.xpose.msra.mxu0 0.0
    %251 = vmatprep.subr.mxu0 0.0
    %252 = vmatpush2.xpose.msra.mxu0 0.0
    %253 = vmatprep.mubr.f32.mxu0 0.0
    %254 = vmatmul.mubr.f32.gmra.mxu0 %v154
    %v255 = vpop.f32.mrf.mxu0
    %v256 = vadd.f32 %v151, %v255
    %v257 = vpop.f32.mrf.mxu0
    %258 = vmatprep.mubr.f32.mxu0 0.0
    %259 = vmatmul.mubr.f32.gmra.mxu0 %v157
    %v260 = vpop.f32.mrf.mxu0
    %v261 = vadd.f32 %v151, %v260
    %v262 = vpop.f32.mrf.mxu0
    %263 = vmatprep.mubr.f32.mxu0 0.0
    %264 = vmatmul.mubr.f32.gmra.mxu0 %v160
    %v265 = vpop.f32.mrf.mxu0
    %v266 = vadd.f32 %v151, %v265
    %v267 = vpop.f32.mrf.mxu0
    %268 = vmatprep.mubr.f32.mxu0 0.0
    %269 = vmatmul.mubr.f32.gmra.mxu0 %v163
    %v270 = vpop.f32.mrf.mxu0
    %v271 = vadd.f32 %v151, %v270
    %v272 = vpop.f32.mrf.mxu0
    %273 = vdwg.mxu0
    %276 = vrot.lane.b32.xlu0 %v130, 120
    %v277 = vpop.permute.xlu0 %276
    %278 = vrot.lane.b32.xlu0 %v135, 120
    %v279 = vpop.permute.xlu0 %278
    %282 = vrot.lane.b32.xlu0 %v130, 112
    %v283 = vpop.permute.xlu0 %282
    %284 = vrot.lane.b32.xlu0 %v135, 112
    %v285 = vpop.permute.xlu0 %284
    %288 = vrot.lane.b32.xlu0 %v130, 104
    %v289 = vpop.permute.xlu0 %288
    %290 = vrot.lane.b32.xlu0 %v135, 104
    %v291 = vpop.permute.xlu0 %290
    %v294 = vcombine.low %v130, %v283
    %v295 = vcombine.high %v130, %v283
    %v297 = vunpack.c.l.s4 1983009808
    %v298 = vunpack.c.0.s8 %v297
    %v299 = vlaneseq
    %v300 = vshrl.u32 %v299, 7
    %v301 = vsub.s32 %v298, %v300
    %v302 = vrot.slane %v294, %v301
    %v304 = vunpack.c.l.s4 1983009808
    %v305 = vunpack.c.0.s8 %v304
    %v306 = vlaneseq
    %v307 = vshrl.u32 %v306, 7
    %v308 = vsub.s32 %v305, %v307
    %v309 = vrot.slane %v295, %v308
    %v310 = vcombine.low %v277, %v289
    %v311 = vcombine.high %v277, %v289
    %v313 = vunpack.c.l.s4 1983009808
    %v314 = vunpack.c.0.s8 %v313
    %v315 = vlaneseq
    %v316 = vshrl.u32 %v315, 7
    %v317 = vsub.s32 %v314, %v316
    %v318 = vrot.slane %v310, %v317
    %v320 = vunpack.c.l.s4 1983009808
    %v321 = vunpack.c.0.s8 %v320
    %v322 = vlaneseq
    %v323 = vshrl.u32 %v322, 7
    %v324 = vsub.s32 %v321, %v323
    %v325 = vrot.slane %v311, %v324
    %v326 = vcombine.low %v302, %v318
    %v327 = vcombine.high %v302, %v318
    %v329 = vunpack.c.l.s4 1934713408
    %v330 = vunpack.c.0.s8 %v329
    %v331 = vlaneseq
    %v332 = vshrl.u32 %v331, 7
    %v333 = vsub.s32 %v330, %v332
    %v334 = vrot.slane %v326, %v333
    %v336 = vunpack.c.l.s4 1934713408
    %v337 = vunpack.c.0.s8 %v336
    %v338 = vlaneseq
    %v339 = vshrl.u32 %v338, 7
    %v340 = vsub.s32 %v337, %v339
    %v341 = vrot.slane %v327, %v340
    %v342 = vcombine.low %v309, %v325
    %v343 = vcombine.high %v309, %v325
    %v345 = vunpack.c.l.s4 1934713408
    %v346 = vunpack.c.0.s8 %v345
    %v347 = vlaneseq
    %v348 = vshrl.u32 %v347, 7
    %v349 = vsub.s32 %v346, %v348
    %v350 = vrot.slane %v342, %v349
    %v352 = vunpack.c.l.s4 1934713408
    %v353 = vunpack.c.0.s8 %v352
    %v354 = vlaneseq
    %v355 = vshrl.u32 %v354, 7
    %v356 = vsub.s32 %v353, %v355
    %v357 = vrot.slane %v343, %v356
    %v358 = vcombine.high %v334, 0.0
    %v359 = vcombine.high %v341, 0.0
    %v360 = vcombine.high %v350, 0.0
    %v361 = vcombine.high %v357, 0.0
    %v362 = vcombine.low %v135, %v285
    %v363 = vcombine.high %v135, %v285
    %v365 = vunpack.c.l.s4 1983009808
    %v366 = vunpack.c.0.s8 %v365
    %v367 = vlaneseq
    %v368 = vshrl.u32 %v367, 7
    %v369 = vsub.s32 %v366, %v368
    %v370 = vrot.slane %v362, %v369
    %v372 = vunpack.c.l.s4 1983009808
    %v373 = vunpack.c.0.s8 %v372
    %v374 = vlaneseq
    %v375 = vshrl.u32 %v374, 7
    %v376 = vsub.s32 %v373, %v375
    %v377 = vrot.slane %v363, %v376
    %v378 = vcombine.low %v279, %v291
    %v379 = vcombine.high %v279, %v291
    %v381 = vunpack.c.l.s4 1983009808
    %v382 = vunpack.c.0.s8 %v381
    %v383 = vlaneseq
    %v384 = vshrl.u32 %v383, 7
    %v385 = vsub.s32 %v382, %v384
    %v386 = vrot.slane %v378, %v385
    %v388 = vunpack.c.l.s4 1983009808
    %v389 = vunpack.c.0.s8 %v388
    %v390 = vlaneseq
    %v391 = vshrl.u32 %v390, 7
    %v392 = vsub.s32 %v389, %v391
    %v393 = vrot.slane %v379, %v392
    %v394 = vcombine.low %v370, %v386
    %v395 = vcombine.high %v370, %v386
    %v397 = vunpack.c.l.s4 1934713408
    %v398 = vunpack.c.0.s8 %v397
    %v399 = vlaneseq
    %v400 = vshrl.u32 %v399, 7
    %v401 = vsub.s32 %v398, %v400
    %v402 = vrot.slane %v394, %v401
    %v404 = vunpack.c.l.s4 1934713408
    %v405 = vunpack.c.0.s8 %v404
    %v406 = vlaneseq
    %v407 = vshrl.u32 %v406, 7
    %v408 = vsub.s32 %v405, %v407
    %v409 = vrot.slane %v395, %v408
    %v410 = vcombine.low %v377, %v393
    %v411 = vcombine.high %v377, %v393
    %v413 = vunpack.c.l.s4 1934713408
    %v414 = vunpack.c.0.s8 %v413
    %v415 = vlaneseq
    %v416 = vshrl.u32 %v415, 7
    %v417 = vsub.s32 %v414, %v416
    %v418 = vrot.slane %v410, %v417
    %v420 = vunpack.c.l.s4 1934713408
    %v421 = vunpack.c.0.s8 %v420
    %v422 = vlaneseq
    %v423 = vshrl.u32 %v422, 7
    %v424 = vsub.s32 %v421, %v423
    %v425 = vrot.slane %v411, %v424
    %v426 = vcombine.high %v402, 0.0
    %v427 = vcombine.high %v409, 0.0
    %v428 = vcombine.high %v418, 0.0
    %v429 = vcombine.high %v425, 0.0
    %v430 = vcombine.low %v334, %v341
    %v432 = vunpack.c.l.s4 1983009808
    %v433 = vunpack.c.0.s8 %v432
    %v434 = vlaneseq
    %v435 = vshrl.u32 %v434, 7
    %v436 = vsub.s32 %v433, %v435
    %v437 = vrot.slane %v430, %v436
    %v438 = vcombine.low %v358, %v359
    %v440 = vunpack.c.l.s4 1983009808
    %v441 = vunpack.c.0.s8 %v440
    %v442 = vlaneseq
    %v443 = vshrl.u32 %v442, 7
    %v444 = vsub.s32 %v441, %v443
    %v445 = vrot.slane %v438, %v444
    %v446 = vcombine.low %v350, %v357
    %v448 = vunpack.c.l.s4 1983009808
    %v449 = vunpack.c.0.s8 %v448
    %v450 = vlaneseq
    %v451 = vshrl.u32 %v450, 7
    %v452 = vsub.s32 %v449, %v451
    %v453 = vrot.slane %v446, %v452
    %v454 = vcombine.low %v360, %v361
    %v456 = vunpack.c.l.s4 1983009808
    %v457 = vunpack.c.0.s8 %v456
    %v458 = vlaneseq
    %v459 = vshrl.u32 %v458, 7
    %v460 = vsub.s32 %v457, %v459
    %v461 = vrot.slane %v454, %v460
    %v462 = vcombine.low %v437, %v445
    %v463 = vcombine.high %v437, %v445
    %v465 = vunpack.c.l.s4 1934713408
    %v466 = vunpack.c.0.s8 %v465
    %v467 = vlaneseq
    %v468 = vshrl.u32 %v467, 7
    %v469 = vsub.s32 %v466, %v468
    %v470 = vrot.slane %v462, %v469
    %v472 = vunpack.c.l.s4 1934713408
    %v473 = vunpack.c.0.s8 %v472
    %v474 = vlaneseq
    %v475 = vshrl.u32 %v474, 7
    %v476 = vsub.s32 %v473, %v475
    %v477 = vrot.slane %v463, %v476
    %v478 = vcombine.low %v453, %v461
    %v479 = vcombine.high %v453, %v461
    %v481 = vunpack.c.l.s4 1934713408
    %v482 = vunpack.c.0.s8 %v481
    %v483 = vlaneseq
    %v484 = vshrl.u32 %v483, 7
    %v485 = vsub.s32 %v482, %v484
    %v486 = vrot.slane %v478, %v485
    %v488 = vunpack.c.l.s4 1934713408
    %v489 = vunpack.c.0.s8 %v488
    %v490 = vlaneseq
    %v491 = vshrl.u32 %v490, 7
    %v492 = vsub.s32 %v489, %v491
    %v493 = vrot.slane %v479, %v492
    %v494 = vcombine.low %v470, %v486
    %v495 = vcombine.high %v470, %v486
    %v496 = vcombine.low %v477, %v493
    %v497 = vcombine.high %v477, %v493
    %v498 = vcombine.low %v402, %v409
    %v500 = vunpack.c.l.s4 1983009808
    %v501 = vunpack.c.0.s8 %v500
    %v502 = vlaneseq
    %v503 = vshrl.u32 %v502, 7
    %v504 = vsub.s32 %v501, %v503
    %v505 = vrot.slane %v498, %v504
    %v506 = vcombine.low %v426, %v427
    %v508 = vunpack.c.l.s4 1983009808
    %v509 = vunpack.c.0.s8 %v508
    %v510 = vlaneseq
    %v511 = vshrl.u32 %v510, 7
    %v512 = vsub.s32 %v509, %v511
    %v513 = vrot.slane %v506, %v512
    %v514 = vcombine.low %v418, %v425
    %v516 = vunpack.c.l.s4 1983009808
    %v517 = vunpack.c.0.s8 %v516
    %v518 = vlaneseq
    %v519 = vshrl.u32 %v518, 7
    %v520 = vsub.s32 %v517, %v519
    %v521 = vrot.slane %v514, %v520
    %v522 = vcombine.low %v428, %v429
    %v524 = vunpack.c.l.s4 1983009808
    %v525 = vunpack.c.0.s8 %v524
    %v526 = vlaneseq
    %v527 = vshrl.u32 %v526, 7
    %v528 = vsub.s32 %v525, %v527
    %v529 = vrot.slane %v522, %v528
    %v530 = vcombine.low %v505, %v513
    %v531 = vcombine.high %v505, %v513
    %v533 = vunpack.c.l.s4 1934713408
    %v534 = vunpack.c.0.s8 %v533
    %v535 = vlaneseq
    %v536 = vshrl.u32 %v535, 7
    %v537 = vsub.s32 %v534, %v536
    %v538 = vrot.slane %v530, %v537
    %v540 = vunpack.c.l.s4 1934713408
    %v541 = vunpack.c.0.s8 %v540
    %v542 = vlaneseq
    %v543 = vshrl.u32 %v542, 7
    %v544 = vsub.s32 %v541, %v543
    %v545 = vrot.slane %v531, %v544
    %v546 = vcombine.low %v521, %v529
    %v547 = vcombine.high %v521, %v529
    %v549 = vunpack.c.l.s4 1934713408
    %v550 = vunpack.c.0.s8 %v549
    %v551 = vlaneseq
    %v552 = vshrl.u32 %v551, 7
    %v553 = vsub.s32 %v550, %v552
    %v554 = vrot.slane %v546, %v553
    %v556 = vunpack.c.l.s4 1934713408
    %v557 = vunpack.c.0.s8 %v556
    %v558 = vlaneseq
    %v559 = vshrl.u32 %v558, 7
    %v560 = vsub.s32 %v557, %v559
    %v561 = vrot.slane %v547, %v560
    %v562 = vcombine.low %v538, %v554
    %v563 = vcombine.high %v538, %v554
    %v564 = vcombine.low %v545, %v561
    %v565 = vcombine.high %v545, %v561
    %570 = vrot.lane.b32.xlu0 %v256, 120
    %v571 = vpop.permute.xlu0 %570
    %572 = vrot.lane.b32.xlu0 %v261, 120
    %v573 = vpop.permute.xlu0 %572
    %574 = vrot.lane.b32.xlu0 %v266, 120
    %v575 = vpop.permute.xlu0 %574
    %576 = vrot.lane.b32.xlu0 %v271, 120
    %v577 = vpop.permute.xlu0 %576
    %582 = vrot.lane.b32.xlu0 %v256, 112
    %v583 = vpop.permute.xlu0 %582
    %584 = vrot.lane.b32.xlu0 %v261, 112
    %v585 = vpop.permute.xlu0 %584
    %586 = vrot.lane.b32.xlu0 %v266, 112
    %v587 = vpop.permute.xlu0 %586
    %588 = vrot.lane.b32.xlu0 %v271, 112
    %v589 = vpop.permute.xlu0 %588
    %594 = vrot.lane.b32.xlu0 %v256, 104
    %v595 = vpop.permute.xlu0 %594
    %596 = vrot.lane.b32.xlu0 %v261, 104
    %v597 = vpop.permute.xlu0 %596
    %598 = vrot.lane.b32.xlu0 %v266, 104
    %v599 = vpop.permute.xlu0 %598
    %600 = vrot.lane.b32.xlu0 %v271, 104
    %v601 = vpop.permute.xlu0 %600
    %v606 = vcombine.low %v256, %v583
    %v607 = vcombine.high %v256, %v583
    %v609 = vunpack.c.l.s4 1983009808
    %v610 = vunpack.c.0.s8 %v609
    %v611 = vlaneseq
    %v612 = vshrl.u32 %v611, 7
    %v613 = vsub.s32 %v610, %v612
    %v614 = vrot.slane %v606, %v613
    %v616 = vunpack.c.l.s4 1983009808
    %v617 = vunpack.c.0.s8 %v616
    %v618 = vlaneseq
    %v619 = vshrl.u32 %v618, 7
    %v620 = vsub.s32 %v617, %v619
    %v621 = vrot.slane %v607, %v620
    %v622 = vcombine.low %v571, %v595
    %v623 = vcombine.high %v571, %v595
    %v625 = vunpack.c.l.s4 1983009808
    %v626 = vunpack.c.0.s8 %v625
    %v627 = vlaneseq
    %v628 = vshrl.u32 %v627, 7
    %v629 = vsub.s32 %v626, %v628
    %v630 = vrot.slane %v622, %v629
    %v632 = vunpack.c.l.s4 1983009808
    %v633 = vunpack.c.0.s8 %v632
    %v634 = vlaneseq
    %v635 = vshrl.u32 %v634, 7
    %v636 = vsub.s32 %v633, %v635
    %v637 = vrot.slane %v623, %v636
    %v638 = vcombine.low %v614, %v630
    %v639 = vcombine.high %v614, %v630
    %v641 = vunpack.c.l.s4 1934713408
    %v642 = vunpack.c.0.s8 %v641
    %v643 = vlaneseq
    %v644 = vshrl.u32 %v643, 7
    %v645 = vsub.s32 %v642, %v644
    %v646 = vrot.slane %v638, %v645
    %v648 = vunpack.c.l.s4 1934713408
    %v649 = vunpack.c.0.s8 %v648
    %v650 = vlaneseq
    %v651 = vshrl.u32 %v650, 7
    %v652 = vsub.s32 %v649, %v651
    %v653 = vrot.slane %v639, %v652
    %v654 = vcombine.low %v621, %v637
    %v655 = vcombine.high %v621, %v637
    %v657 = vunpack.c.l.s4 1934713408
    %v658 = vunpack.c.0.s8 %v657
    %v659 = vlaneseq
    %v660 = vshrl.u32 %v659, 7
    %v661 = vsub.s32 %v658, %v660
    %v662 = vrot.slane %v654, %v661
    %v664 = vunpack.c.l.s4 1934713408
    %v665 = vunpack.c.0.s8 %v664
    %v666 = vlaneseq
    %v667 = vshrl.u32 %v666, 7
    %v668 = vsub.s32 %v665, %v667
    %v669 = vrot.slane %v655, %v668
    %v670 = vcombine.high %v646, 0.0
    %v671 = vcombine.high %v653, 0.0
    %v672 = vcombine.high %v662, 0.0
    %v673 = vcombine.high %v669, 0.0
    %v674 = vcombine.low %v261, %v585
    %v675 = vcombine.high %v261, %v585
    %v677 = vunpack.c.l.s4 1983009808
    %v678 = vunpack.c.0.s8 %v677
    %v679 = vlaneseq
    %v680 = vshrl.u32 %v679, 7
    %v681 = vsub.s32 %v678, %v680
    %v682 = vrot.slane %v674, %v681
    %v684 = vunpack.c.l.s4 1983009808
    %v685 = vunpack.c.0.s8 %v684
    %v686 = vlaneseq
    %v687 = vshrl.u32 %v686, 7
    %v688 = vsub.s32 %v685, %v687
    %v689 = vrot.slane %v675, %v688
    %v690 = vcombine.low %v573, %v597
    %v691 = vcombine.high %v573, %v597
    %v693 = vunpack.c.l.s4 1983009808
    %v694 = vunpack.c.0.s8 %v693
    %v695 = vlaneseq
    %v696 = vshrl.u32 %v695, 7
    %v697 = vsub.s32 %v694, %v696
    %v698 = vrot.slane %v690, %v697
    %v700 = vunpack.c.l.s4 1983009808
    %v701 = vunpack.c.0.s8 %v700
    %v702 = vlaneseq
    %v703 = vshrl.u32 %v702, 7
    %v704 = vsub.s32 %v701, %v703
    %v705 = vrot.slane %v691, %v704
    %v706 = vcombine.low %v682, %v698
    %v707 = vcombine.high %v682, %v698
    %v709 = vunpack.c.l.s4 1934713408
    %v710 = vunpack.c.0.s8 %v709
    %v711 = vlaneseq
    %v712 = vshrl.u32 %v711, 7
    %v713 = vsub.s32 %v710, %v712
    %v714 = vrot.slane %v706, %v713
    %v716 = vunpack.c.l.s4 1934713408
    %v717 = vunpack.c.0.s8 %v716
    %v718 = vlaneseq
    %v719 = vshrl.u32 %v718, 7
    %v720 = vsub.s32 %v717, %v719
    %v721 = vrot.slane %v707, %v720
    %v722 = vcombine.low %v689, %v705
    %v723 = vcombine.high %v689, %v705
    %v725 = vunpack.c.l.s4 1934713408
    %v726 = vunpack.c.0.s8 %v725
    %v727 = vlaneseq
    %v728 = vshrl.u32 %v727, 7
    %v729 = vsub.s32 %v726, %v728
    %v730 = vrot.slane %v722, %v729
    %v732 = vunpack.c.l.s4 1934713408
    %v733 = vunpack.c.0.s8 %v732
    %v734 = vlaneseq
    %v735 = vshrl.u32 %v734, 7
    %v736 = vsub.s32 %v733, %v735
    %v737 = vrot.slane %v723, %v736
    %v738 = vcombine.high %v714, 0.0
    %v739 = vcombine.high %v721, 0.0
    %v740 = vcombine.high %v730, 0.0
    %v741 = vcombine.high %v737, 0.0
    %v742 = vcombine.low %v266, %v587
    %v743 = vcombine.high %v266, %v587
    %v745 = vunpack.c.l.s4 1983009808
    %v746 = vunpack.c.0.s8 %v745
    %v747 = vlaneseq
    %v748 = vshrl.u32 %v747, 7
    %v749 = vsub.s32 %v746, %v748
    %v750 = vrot.slane %v742, %v749
    %v752 = vunpack.c.l.s4 1983009808
    %v753 = vunpack.c.0.s8 %v752
    %v754 = vlaneseq
    %v755 = vshrl.u32 %v754, 7
    %v756 = vsub.s32 %v753, %v755
    %v757 = vrot.slane %v743, %v756
    %v758 = vcombine.low %v575, %v599
    %v759 = vcombine.high %v575, %v599
    %v761 = vunpack.c.l.s4 1983009808
    %v762 = vunpack.c.0.s8 %v761
    %v763 = vlaneseq
    %v764 = vshrl.u32 %v763, 7
    %v765 = vsub.s32 %v762, %v764
    %v766 = vrot.slane %v758, %v765
    %v768 = vunpack.c.l.s4 1983009808
    %v769 = vunpack.c.0.s8 %v768
    %v770 = vlaneseq
    %v771 = vshrl.u32 %v770, 7
    %v772 = vsub.s32 %v769, %v771
    %v773 = vrot.slane %v759, %v772
    %v774 = vcombine.low %v750, %v766
    %v775 = vcombine.high %v750, %v766
    %v777 = vunpack.c.l.s4 1934713408
    %v778 = vunpack.c.0.s8 %v777
    %v779 = vlaneseq
    %v780 = vshrl.u32 %v779, 7
    %v781 = vsub.s32 %v778, %v780
    %v782 = vrot.slane %v774, %v781
    %v784 = vunpack.c.l.s4 1934713408
    %v785 = vunpack.c.0.s8 %v784
    %v786 = vlaneseq
    %v787 = vshrl.u32 %v786, 7
    %v788 = vsub.s32 %v785, %v787
    %v789 = vrot.slane %v775, %v788
    %v790 = vcombine.low %v757, %v773
    %v791 = vcombine.high %v757, %v773
    %v793 = vunpack.c.l.s4 1934713408
    %v794 = vunpack.c.0.s8 %v793
    %v795 = vlaneseq
    %v796 = vshrl.u32 %v795, 7
    %v797 = vsub.s32 %v794, %v796
    %v798 = vrot.slane %v790, %v797
    %v800 = vunpack.c.l.s4 1934713408
    %v801 = vunpack.c.0.s8 %v800
    %v802 = vlaneseq
    %v803 = vshrl.u32 %v802, 7
    %v804 = vsub.s32 %v801, %v803
    %v805 = vrot.slane %v791, %v804
    %v806 = vcombine.high %v782, 0.0
    %v807 = vcombine.high %v789, 0.0
    %v808 = vcombine.high %v798, 0.0
    %v809 = vcombine.high %v805, 0.0
    %v810 = vcombine.low %v271, %v589
    %v811 = vcombine.high %v271, %v589
    %v813 = vunpack.c.l.s4 1983009808
    %v814 = vunpack.c.0.s8 %v813
    %v815 = vlaneseq
    %v816 = vshrl.u32 %v815, 7
    %v817 = vsub.s32 %v814, %v816
    %v818 = vrot.slane %v810, %v817
    %v820 = vunpack.c.l.s4 1983009808
    %v821 = vunpack.c.0.s8 %v820
    %v822 = vlaneseq
    %v823 = vshrl.u32 %v822, 7
    %v824 = vsub.s32 %v821, %v823
    %v825 = vrot.slane %v811, %v824
    %v826 = vcombine.low %v577, %v601
    %v827 = vcombine.high %v577, %v601
    %v829 = vunpack.c.l.s4 1983009808
    %v830 = vunpack.c.0.s8 %v829
    %v831 = vlaneseq
    %v832 = vshrl.u32 %v831, 7
    %v833 = vsub.s32 %v830, %v832
    %v834 = vrot.slane %v826, %v833
    %v836 = vunpack.c.l.s4 1983009808
    %v837 = vunpack.c.0.s8 %v836
    %v838 = vlaneseq
    %v839 = vshrl.u32 %v838, 7
    %v840 = vsub.s32 %v837, %v839
    %v841 = vrot.slane %v827, %v840
    %v842 = vcombine.low %v818, %v834
    %v843 = vcombine.high %v818, %v834
    %v845 = vunpack.c.l.s4 1934713408
    %v846 = vunpack.c.0.s8 %v845
    %v847 = vlaneseq
    %v848 = vshrl.u32 %v847, 7
    %v849 = vsub.s32 %v846, %v848
    %v850 = vrot.slane %v842, %v849
    %v852 = vunpack.c.l.s4 1934713408
    %v853 = vunpack.c.0.s8 %v852
    %v854 = vlaneseq
    %v855 = vshrl.u32 %v854, 7
    %v856 = vsub.s32 %v853, %v855
    %v857 = vrot.slane %v843, %v856
    %v858 = vcombine.low %v825, %v841
    %v859 = vcombine.high %v825, %v841
    %v861 = vunpack.c.l.s4 1934713408
    %v862 = vunpack.c.0.s8 %v861
    %v863 = vlaneseq
    %v864 = vshrl.u32 %v863, 7
    %v865 = vsub.s32 %v862, %v864
    %v866 = vrot.slane %v858, %v865
    %v868 = vunpack.c.l.s4 1934713408
    %v869 = vunpack.c.0.s8 %v868
    %v870 = vlaneseq
    %v871 = vshrl.u32 %v870, 7
    %v872 = vsub.s32 %v869, %v871
    %v873 = vrot.slane %v859, %v872
    %v874 = vcombine.high %v850, 0.0
    %v875 = vcombine.high %v857, 0.0
    %v876 = vcombine.high %v866, 0.0
    %v877 = vcombine.high %v873, 0.0
    %v878 = vcombine.low %v646, %v653
    %v880 = vunpack.c.l.s4 1983009808
    %v881 = vunpack.c.0.s8 %v880
    %v882 = vlaneseq
    %v883 = vshrl.u32 %v882, 7
    %v884 = vsub.s32 %v881, %v883
    %v885 = vrot.slane %v878, %v884
    %v886 = vcombine.low %v670, %v671
    %v888 = vunpack.c.l.s4 1983009808
    %v889 = vunpack.c.0.s8 %v888
    %v890 = vlaneseq
    %v891 = vshrl.u32 %v890, 7
    %v892 = vsub.s32 %v889, %v891
    %v893 = vrot.slane %v886, %v892
    %v894 = vcombine.low %v662, %v669
    %v896 = vunpack.c.l.s4 1983009808
    %v897 = vunpack.c.0.s8 %v896
    %v898 = vlaneseq
    %v899 = vshrl.u32 %v898, 7
    %v900 = vsub.s32 %v897, %v899
    %v901 = vrot.slane %v894, %v900
    %v902 = vcombine.low %v672, %v673
    %v904 = vunpack.c.l.s4 1983009808
    %v905 = vunpack.c.0.s8 %v904
    %v906 = vlaneseq
    %v907 = vshrl.u32 %v906, 7
    %v908 = vsub.s32 %v905, %v907
    %v909 = vrot.slane %v902, %v908
    %v910 = vcombine.low %v885, %v893
    %v911 = vcombine.high %v885, %v893
    %v913 = vunpack.c.l.s4 1934713408
    %v914 = vunpack.c.0.s8 %v913
    %v915 = vlaneseq
    %v916 = vshrl.u32 %v915, 7
    %v917 = vsub.s32 %v914, %v916
    %v918 = vrot.slane %v910, %v917
    %v920 = vunpack.c.l.s4 1934713408
    %v921 = vunpack.c.0.s8 %v920
    %v922 = vlaneseq
    %v923 = vshrl.u32 %v922, 7
    %v924 = vsub.s32 %v921, %v923
    %v925 = vrot.slane %v911, %v924
    %v926 = vcombine.low %v901, %v909
    %v927 = vcombine.high %v901, %v909
    %v929 = vunpack.c.l.s4 1934713408
    %v930 = vunpack.c.0.s8 %v929
    %v931 = vlaneseq
    %v932 = vshrl.u32 %v931, 7
    %v933 = vsub.s32 %v930, %v932
    %v934 = vrot.slane %v926, %v933
    %v936 = vunpack.c.l.s4 1934713408
    %v937 = vunpack.c.0.s8 %v936
    %v938 = vlaneseq
    %v939 = vshrl.u32 %v938, 7
    %v940 = vsub.s32 %v937, %v939
    %v941 = vrot.slane %v927, %v940
    %v942 = vcombine.low %v918, %v934
    %v943 = vcombine.high %v918, %v934
    %v944 = vcombine.low %v925, %v941
    %v945 = vcombine.high %v925, %v941
    %v946 = vcombine.low %v714, %v721
    %v948 = vunpack.c.l.s4 1983009808
    %v949 = vunpack.c.0.s8 %v948
    %v950 = vlaneseq
    %v951 = vshrl.u32 %v950, 7
    %v952 = vsub.s32 %v949, %v951
    %v953 = vrot.slane %v946, %v952
    %v954 = vcombine.low %v738, %v739
    %v956 = vunpack.c.l.s4 1983009808
    %v957 = vunpack.c.0.s8 %v956
    %v958 = vlaneseq
    %v959 = vshrl.u32 %v958, 7
    %v960 = vsub.s32 %v957, %v959
    %v961 = vrot.slane %v954, %v960
    %v962 = vcombine.low %v730, %v737
    %v964 = vunpack.c.l.s4 1983009808
    %v965 = vunpack.c.0.s8 %v964
    %v966 = vlaneseq
    %v967 = vshrl.u32 %v966, 7
    %v968 = vsub.s32 %v965, %v967
    %v969 = vrot.slane %v962, %v968
    %v970 = vcombine.low %v740, %v741
    %v972 = vunpack.c.l.s4 1983009808
    %v973 = vunpack.c.0.s8 %v972
    %v974 = vlaneseq
    %v975 = vshrl.u32 %v974, 7
    %v976 = vsub.s32 %v973, %v975
    %v977 = vrot.slane %v970, %v976
    %v978 = vcombine.low %v953, %v961
    %v979 = vcombine.high %v953, %v961
    %v981 = vunpack.c.l.s4 1934713408
    %v982 = vunpack.c.0.s8 %v981
    %v983 = vlaneseq
    %v984 = vshrl.u32 %v983, 7
    %v985 = vsub.s32 %v982, %v984
    %v986 = vrot.slane %v978, %v985
    %v988 = vunpack.c.l.s4 1934713408
    %v989 = vunpack.c.0.s8 %v988
    %v990 = vlaneseq
    %v991 = vshrl.u32 %v990, 7
    %v992 = vsub.s32 %v989, %v991
    %v993 = vrot.slane %v979, %v992
    %v994 = vcombine.low %v969, %v977
    %v995 = vcombine.high %v969, %v977
    %v997 = vunpack.c.l.s4 1934713408
    %v998 = vunpack.c.0.s8 %v997
    %v999 = vlaneseq
    %v1000 = vshrl.u32 %v999, 7
    %v1001 = vsub.s32 %v998, %v1000
    %v1002 = vrot.slane %v994, %v1001
    %v1004 = vunpack.c.l.s4 1934713408
    %v1005 = vunpack.c.0.s8 %v1004
    %v1006 = vlaneseq
    %v1007 = vshrl.u32 %v1006, 7
    %v1008 = vsub.s32 %v1005, %v1007
    %v1009 = vrot.slane %v995, %v1008
    %v1010 = vcombine.low %v986, %v1002
    %v1011 = vcombine.high %v986, %v1002
    %v1012 = vcombine.low %v993, %v1009
    %v1013 = vcombine.high %v993, %v1009
    %v1014 = vcombine.low %v782, %v789
    %v1016 = vunpack.c.l.s4 1983009808
    %v1017 = vunpack.c.0.s8 %v1016
    %v1018 = vlaneseq
    %v1019 = vshrl.u32 %v1018, 7
    %v1020 = vsub.s32 %v1017, %v1019
    %v1021 = vrot.slane %v1014, %v1020
    %v1022 = vcombine.low %v806, %v807
    %v1024 = vunpack.c.l.s4 1983009808
    %v1025 = vunpack.c.0.s8 %v1024
    %v1026 = vlaneseq
    %v1027 = vshrl.u32 %v1026, 7
    %v1028 = vsub.s32 %v1025, %v1027
    %v1029 = vrot.slane %v1022, %v1028
    %v1030 = vcombine.low %v798, %v805
    %v1032 = vunpack.c.l.s4 1983009808
    %v1033 = vunpack.c.0.s8 %v1032
    %v1034 = vlaneseq
    %v1035 = vshrl.u32 %v1034, 7
    %v1036 = vsub.s32 %v1033, %v1035
    %v1037 = vrot.slane %v1030, %v1036
    %v1038 = vcombine.low %v808, %v809
    %v1040 = vunpack.c.l.s4 1983009808
    %v1041 = vunpack.c.0.s8 %v1040
    %v1042 = vlaneseq
    %v1043 = vshrl.u32 %v1042, 7
    %v1044 = vsub.s32 %v1041, %v1043
    %v1045 = vrot.slane %v1038, %v1044
    %v1046 = vcombine.low %v1021, %v1029
    %v1047 = vcombine.high %v1021, %v1029
    %v1049 = vunpack.c.l.s4 1934713408
    %v1050 = vunpack.c.0.s8 %v1049
    %v1051 = vlaneseq
    %v1052 = vshrl.u32 %v1051, 7
    %v1053 = vsub.s32 %v1050, %v1052
    %v1054 = vrot.slane %v1046, %v1053
    %v1056 = vunpack.c.l.s4 1934713408
    %v1057 = vunpack.c.0.s8 %v1056
    %v1058 = vlaneseq
    %v1059 = vshrl.u32 %v1058, 7
    %v1060 = vsub.s32 %v1057, %v1059
    %v1061 = vrot.slane %v1047, %v1060
    %v1062 = vcombine.low %v1037, %v1045
    %v1063 = vcombine.high %v1037, %v1045
    %v1065 = vunpack.c.l.s4 1934713408
    %v1066 = vunpack.c.0.s8 %v1065
    %v1067 = vlaneseq
    %v1068 = vshrl.u32 %v1067, 7
    %v1069 = vsub.s32 %v1066, %v1068
    %v1070 = vrot.slane %v1062, %v1069
    %v1072 = vunpack.c.l.s4 1934713408
    %v1073 = vunpack.c.0.s8 %v1072
    %v1074 = vlaneseq
    %v1075 = vshrl.u32 %v1074, 7
    %v1076 = vsub.s32 %v1073, %v1075
    %v1077 = vrot.slane %v1063, %v1076
    %v1078 = vcombine.low %v1054, %v1070
    %v1079 = vcombine.high %v1054, %v1070
    %v1080 = vcombine.low %v1061, %v1077
    %v1081 = vcombine.high %v1061, %v1077
    %v1082 = vcombine.low %v850, %v857
    %v1084 = vunpack.c.l.s4 1983009808
    %v1085 = vunpack.c.0.s8 %v1084
    %v1086 = vlaneseq
    %v1087 = vshrl.u32 %v1086, 7
    %v1088 = vsub.s32 %v1085, %v1087
    %v1089 = vrot.slane %v1082, %v1088
    %v1090 = vcombine.low %v874, %v875
    %v1092 = vunpack.c.l.s4 1983009808
    %v1093 = vunpack.c.0.s8 %v1092
    %v1094 = vlaneseq
    %v1095 = vshrl.u32 %v1094, 7
    %v1096 = vsub.s32 %v1093, %v1095
    %v1097 = vrot.slane %v1090, %v1096
    %v1098 = vcombine.low %v866, %v873
    %v1100 = vunpack.c.l.s4 1983009808
    %v1101 = vunpack.c.0.s8 %v1100
    %v1102 = vlaneseq
    %v1103 = vshrl.u32 %v1102, 7
    %v1104 = vsub.s32 %v1101, %v1103
    %v1105 = vrot.slane %v1098, %v1104
    %v1106 = vcombine.low %v876, %v877
    %v1108 = vunpack.c.l.s4 1983009808
    %v1109 = vunpack.c.0.s8 %v1108
    %v1110 = vlaneseq
    %v1111 = vshrl.u32 %v1110, 7
    %v1112 = vsub.s32 %v1109, %v1111
    %v1113 = vrot.slane %v1106, %v1112
    %v1114 = vcombine.low %v1089, %v1097
    %v1115 = vcombine.high %v1089, %v1097
    %v1117 = vunpack.c.l.s4 1934713408
    %v1118 = vunpack.c.0.s8 %v1117
    %v1119 = vlaneseq
    %v1120 = vshrl.u32 %v1119, 7
    %v1121 = vsub.s32 %v1118, %v1120
    %v1122 = vrot.slane %v1114, %v1121
    %v1124 = vunpack.c.l.s4 1934713408
    %v1125 = vunpack.c.0.s8 %v1124
    %v1126 = vlaneseq
    %v1127 = vshrl.u32 %v1126, 7
    %v1128 = vsub.s32 %v1125, %v1127
    %v1129 = vrot.slane %v1115, %v1128
    %v1130 = vcombine.low %v1105, %v1113
    %v1131 = vcombine.high %v1105, %v1113
    %v1133 = vunpack.c.l.s4 1934713408
    %v1134 = vunpack.c.0.s8 %v1133
    %v1135 = vlaneseq
    %v1136 = vshrl.u32 %v1135, 7
    %v1137 = vsub.s32 %v1134, %v1136
    %v1138 = vrot.slane %v1130, %v1137
    %v1140 = vunpack.c.l.s4 1934713408
    %v1141 = vunpack.c.0.s8 %v1140
    %v1142 = vlaneseq
    %v1143 = vshrl.u32 %v1142, 7
    %v1144 = vsub.s32 %v1141, %v1143
    %v1145 = vrot.slane %v1131, %v1144
    %v1146 = vcombine.low %v1122, %v1138
    %v1147 = vcombine.high %v1122, %v1138
    %v1148 = vcombine.low %v1129, %v1145
    %v1149 = vcombine.high %v1129, %v1145
    %1150 = vrot.lane.b32.xlu0 %v256, 96
    %v1151 = vpop.permute.xlu0 %1150
    %1152 = vrot.lane.b32.xlu0 %v261, 96
    %v1153 = vpop.permute.xlu0 %1152
    %1154 = vrot.lane.b32.xlu0 %v266, 96
    %v1155 = vpop.permute.xlu0 %1154
    %1156 = vrot.lane.b32.xlu0 %v271, 96
    %v1157 = vpop.permute.xlu0 %1156
    %1158 = vrot.lane.b32.xlu0 %v571, 96
    %v1159 = vpop.permute.xlu0 %1158
    %1160 = vrot.lane.b32.xlu0 %v573, 96
    %v1161 = vpop.permute.xlu0 %1160
    %1162 = vrot.lane.b32.xlu0 %v575, 96
    %v1163 = vpop.permute.xlu0 %1162
    %1164 = vrot.lane.b32.xlu0 %v577, 96
    %v1165 = vpop.permute.xlu0 %1164
    %1166 = vrot.lane.b32.xlu0 %v583, 96
    %v1167 = vpop.permute.xlu0 %1166
    %1168 = vrot.lane.b32.xlu0 %v585, 96
    %v1169 = vpop.permute.xlu0 %1168
    %1170 = vrot.lane.b32.xlu0 %v587, 96
    %v1171 = vpop.permute.xlu0 %1170
    %1172 = vrot.lane.b32.xlu0 %v589, 96
    %v1173 = vpop.permute.xlu0 %1172
    %1174 = vrot.lane.b32.xlu0 %v595, 96
    %v1175 = vpop.permute.xlu0 %1174
    %1176 = vrot.lane.b32.xlu0 %v597, 96
    %v1177 = vpop.permute.xlu0 %1176
    %1178 = vrot.lane.b32.xlu0 %v599, 96
    %v1179 = vpop.permute.xlu0 %1178
    %1180 = vrot.lane.b32.xlu0 %v601, 96
    %v1181 = vpop.permute.xlu0 %1180
    %v1198 = vcombine.low %v1151, %v1167
    %v1199 = vcombine.high %v1151, %v1167
    %v1201 = vunpack.c.l.s4 1983009808
    %v1202 = vunpack.c.0.s8 %v1201
    %v1203 = vlaneseq
    %v1204 = vshrl.u32 %v1203, 7
    %v1205 = vsub.s32 %v1202, %v1204
    %v1206 = vrot.slane %v1198, %v1205
    %v1208 = vunpack.c.l.s4 1983009808
    %v1209 = vunpack.c.0.s8 %v1208
    %v1210 = vlaneseq
    %v1211 = vshrl.u32 %v1210, 7
    %v1212 = vsub.s32 %v1209, %v1211
    %v1213 = vrot.slane %v1199, %v1212
    %v1214 = vcombine.low %v1159, %v1175
    %v1215 = vcombine.high %v1159, %v1175
    %v1217 = vunpack.c.l.s4 1983009808
    %v1218 = vunpack.c.0.s8 %v1217
    %v1219 = vlaneseq
    %v1220 = vshrl.u32 %v1219, 7
    %v1221 = vsub.s32 %v1218, %v1220
    %v1222 = vrot.slane %v1214, %v1221
    %v1224 = vunpack.c.l.s4 1983009808
    %v1225 = vunpack.c.0.s8 %v1224
    %v1226 = vlaneseq
    %v1227 = vshrl.u32 %v1226, 7
    %v1228 = vsub.s32 %v1225, %v1227
    %v1229 = vrot.slane %v1215, %v1228
    %v1230 = vcombine.low %v1206, %v1222
    %v1231 = vcombine.high %v1206, %v1222
    %v1233 = vunpack.c.l.s4 1934713408
    %v1234 = vunpack.c.0.s8 %v1233
    %v1235 = vlaneseq
    %v1236 = vshrl.u32 %v1235, 7
    %v1237 = vsub.s32 %v1234, %v1236
    %v1238 = vrot.slane %v1230, %v1237
    %v1240 = vunpack.c.l.s4 1934713408
    %v1241 = vunpack.c.0.s8 %v1240
    %v1242 = vlaneseq
    %v1243 = vshrl.u32 %v1242, 7
    %v1244 = vsub.s32 %v1241, %v1243
    %v1245 = vrot.slane %v1231, %v1244
    %v1246 = vcombine.low %v1213, %v1229
    %v1247 = vcombine.high %v1213, %v1229
    %v1249 = vunpack.c.l.s4 1934713408
    %v1250 = vunpack.c.0.s8 %v1249
    %v1251 = vlaneseq
    %v1252 = vshrl.u32 %v1251, 7
    %v1253 = vsub.s32 %v1250, %v1252
    %v1254 = vrot.slane %v1246, %v1253
    %v1256 = vunpack.c.l.s4 1934713408
    %v1257 = vunpack.c.0.s8 %v1256
    %v1258 = vlaneseq
    %v1259 = vshrl.u32 %v1258, 7
    %v1260 = vsub.s32 %v1257, %v1259
    %v1261 = vrot.slane %v1247, %v1260
    %v1262 = vcombine.high %v1238, 0.0
    %v1263 = vcombine.high %v1245, 0.0
    %v1264 = vcombine.high %v1254, 0.0
    %v1265 = vcombine.high %v1261, 0.0
    %v1266 = vcombine.low %v1153, %v1169
    %v1267 = vcombine.high %v1153, %v1169
    %v1269 = vunpack.c.l.s4 1983009808
    %v1270 = vunpack.c.0.s8 %v1269
    %v1271 = vlaneseq
    %v1272 = vshrl.u32 %v1271, 7
    %v1273 = vsub.s32 %v1270, %v1272
    %v1274 = vrot.slane %v1266, %v1273
    %v1276 = vunpack.c.l.s4 1983009808
    %v1277 = vunpack.c.0.s8 %v1276
    %v1278 = vlaneseq
    %v1279 = vshrl.u32 %v1278, 7
    %v1280 = vsub.s32 %v1277, %v1279
    %v1281 = vrot.slane %v1267, %v1280
    %v1282 = vcombine.low %v1161, %v1177
    %v1283 = vcombine.high %v1161, %v1177
    %v1285 = vunpack.c.l.s4 1983009808
    %v1286 = vunpack.c.0.s8 %v1285
    %v1287 = vlaneseq
    %v1288 = vshrl.u32 %v1287, 7
    %v1289 = vsub.s32 %v1286, %v1288
    %v1290 = vrot.slane %v1282, %v1289
    %v1292 = vunpack.c.l.s4 1983009808
    %v1293 = vunpack.c.0.s8 %v1292
    %v1294 = vlaneseq
    %v1295 = vshrl.u32 %v1294, 7
    %v1296 = vsub.s32 %v1293, %v1295
    %v1297 = vrot.slane %v1283, %v1296
    %v1298 = vcombine.low %v1274, %v1290
    %v1299 = vcombine.high %v1274, %v1290
    %v1301 = vunpack.c.l.s4 1934713408
    %v1302 = vunpack.c.0.s8 %v1301
    %v1303 = vlaneseq
    %v1304 = vshrl.u32 %v1303, 7
    %v1305 = vsub.s32 %v1302, %v1304
    %v1306 = vrot.slane %v1298, %v1305
    %v1308 = vunpack.c.l.s4 1934713408
    %v1309 = vunpack.c.0.s8 %v1308
    %v1310 = vlaneseq
    %v1311 = vshrl.u32 %v1310, 7
    %v1312 = vsub.s32 %v1309, %v1311
    %v1313 = vrot.slane %v1299, %v1312
    %v1314 = vcombine.low %v1281, %v1297
    %v1315 = vcombine.high %v1281, %v1297
    %v1317 = vunpack.c.l.s4 1934713408
    %v1318 = vunpack.c.0.s8 %v1317
    %v1319 = vlaneseq
    %v1320 = vshrl.u32 %v1319, 7
    %v1321 = vsub.s32 %v1318, %v1320
    %v1322 = vrot.slane %v1314, %v1321
    %v1324 = vunpack.c.l.s4 1934713408
    %v1325 = vunpack.c.0.s8 %v1324
    %v1326 = vlaneseq
    %v1327 = vshrl.u32 %v1326, 7
    %v1328 = vsub.s32 %v1325, %v1327
    %v1329 = vrot.slane %v1315, %v1328
    %v1330 = vcombine.high %v1306, 0.0
    %v1331 = vcombine.high %v1313, 0.0
    %v1332 = vcombine.high %v1322, 0.0
    %v1333 = vcombine.high %v1329, 0.0
    %v1334 = vcombine.low %v1155, %v1171
    %v1335 = vcombine.high %v1155, %v1171
    %v1337 = vunpack.c.l.s4 1983009808
    %v1338 = vunpack.c.0.s8 %v1337
    %v1339 = vlaneseq
    %v1340 = vshrl.u32 %v1339, 7
    %v1341 = vsub.s32 %v1338, %v1340
    %v1342 = vrot.slane %v1334, %v1341
    %v1344 = vunpack.c.l.s4 1983009808
    %v1345 = vunpack.c.0.s8 %v1344
    %v1346 = vlaneseq
    %v1347 = vshrl.u32 %v1346, 7
    %v1348 = vsub.s32 %v1345, %v1347
    %v1349 = vrot.slane %v1335, %v1348
    %v1350 = vcombine.low %v1163, %v1179
    %v1351 = vcombine.high %v1163, %v1179
    %v1353 = vunpack.c.l.s4 1983009808
    %v1354 = vunpack.c.0.s8 %v1353
    %v1355 = vlaneseq
    %v1356 = vshrl.u32 %v1355, 7
    %v1357 = vsub.s32 %v1354, %v1356
    %v1358 = vrot.slane %v1350, %v1357
    %v1360 = vunpack.c.l.s4 1983009808
    %v1361 = vunpack.c.0.s8 %v1360
    %v1362 = vlaneseq
    %v1363 = vshrl.u32 %v1362, 7
    %v1364 = vsub.s32 %v1361, %v1363
    %v1365 = vrot.slane %v1351, %v1364
    %v1366 = vcombine.low %v1342, %v1358
    %v1367 = vcombine.high %v1342, %v1358
    %v1369 = vunpack.c.l.s4 1934713408
    %v1370 = vunpack.c.0.s8 %v1369
    %v1371 = vlaneseq
    %v1372 = vshrl.u32 %v1371, 7
    %v1373 = vsub.s32 %v1370, %v1372
    %v1374 = vrot.slane %v1366, %v1373
    %v1376 = vunpack.c.l.s4 1934713408
    %v1377 = vunpack.c.0.s8 %v1376
    %v1378 = vlaneseq
    %v1379 = vshrl.u32 %v1378, 7
    %v1380 = vsub.s32 %v1377, %v1379
    %v1381 = vrot.slane %v1367, %v1380
    %v1382 = vcombine.low %v1349, %v1365
    %v1383 = vcombine.high %v1349, %v1365
    %v1385 = vunpack.c.l.s4 1934713408
    %v1386 = vunpack.c.0.s8 %v1385
    %v1387 = vlaneseq
    %v1388 = vshrl.u32 %v1387, 7
    %v1389 = vsub.s32 %v1386, %v1388
    %v1390 = vrot.slane %v1382, %v1389
    %v1392 = vunpack.c.l.s4 1934713408
    %v1393 = vunpack.c.0.s8 %v1392
    %v1394 = vlaneseq
    %v1395 = vshrl.u32 %v1394, 7
    %v1396 = vsub.s32 %v1393, %v1395
    %v1397 = vrot.slane %v1383, %v1396
    %v1398 = vcombine.high %v1374, 0.0
    %v1399 = vcombine.high %v1381, 0.0
    %v1400 = vcombine.high %v1390, 0.0
    %v1401 = vcombine.high %v1397, 0.0
    %v1402 = vcombine.low %v1157, %v1173
    %v1403 = vcombine.high %v1157, %v1173
    %v1405 = vunpack.c.l.s4 1983009808
    %v1406 = vunpack.c.0.s8 %v1405
    %v1407 = vlaneseq
    %v1408 = vshrl.u32 %v1407, 7
    %v1409 = vsub.s32 %v1406, %v1408
    %v1410 = vrot.slane %v1402, %v1409
    %v1412 = vunpack.c.l.s4 1983009808
    %v1413 = vunpack.c.0.s8 %v1412
    %v1414 = vlaneseq
    %v1415 = vshrl.u32 %v1414, 7
    %v1416 = vsub.s32 %v1413, %v1415
    %v1417 = vrot.slane %v1403, %v1416
    %v1418 = vcombine.low %v1165, %v1181
    %v1419 = vcombine.high %v1165, %v1181
    %v1421 = vunpack.c.l.s4 1983009808
    %v1422 = vunpack.c.0.s8 %v1421
    %v1423 = vlaneseq
    %v1424 = vshrl.u32 %v1423, 7
    %v1425 = vsub.s32 %v1422, %v1424
    %v1426 = vrot.slane %v1418, %v1425
    %v1428 = vunpack.c.l.s4 1983009808
    %v1429 = vunpack.c.0.s8 %v1428
    %v1430 = vlaneseq
    %v1431 = vshrl.u32 %v1430, 7
    %v1432 = vsub.s32 %v1429, %v1431
    %v1433 = vrot.slane %v1419, %v1432
    %v1434 = vcombine.low %v1410, %v1426
    %v1435 = vcombine.high %v1410, %v1426
    %v1437 = vunpack.c.l.s4 1934713408
    %v1438 = vunpack.c.0.s8 %v1437
    %v1439 = vlaneseq
    %v1440 = vshrl.u32 %v1439, 7
    %v1441 = vsub.s32 %v1438, %v1440
    %v1442 = vrot.slane %v1434, %v1441
    %v1444 = vunpack.c.l.s4 1934713408
    %v1445 = vunpack.c.0.s8 %v1444
    %v1446 = vlaneseq
    %v1447 = vshrl.u32 %v1446, 7
    %v1448 = vsub.s32 %v1445, %v1447
    %v1449 = vrot.slane %v1435, %v1448
    %v1450 = vcombine.low %v1417, %v1433
    %v1451 = vcombine.high %v1417, %v1433
    %v1453 = vunpack.c.l.s4 1934713408
    %v1454 = vunpack.c.0.s8 %v1453
    %v1455 = vlaneseq
    %v1456 = vshrl.u32 %v1455, 7
    %v1457 = vsub.s32 %v1454, %v1456
    %v1458 = vrot.slane %v1450, %v1457
    %v1460 = vunpack.c.l.s4 1934713408
    %v1461 = vunpack.c.0.s8 %v1460
    %v1462 = vlaneseq
    %v1463 = vshrl.u32 %v1462, 7
    %v1464 = vsub.s32 %v1461, %v1463
    %v1465 = vrot.slane %v1451, %v1464
    %v1466 = vcombine.high %v1442, 0.0
    %v1467 = vcombine.high %v1449, 0.0
    %v1468 = vcombine.high %v1458, 0.0
    %v1469 = vcombine.high %v1465, 0.0
    %v1470 = vcombine.low %v1238, %v1245
    %v1472 = vunpack.c.l.s4 1983009808
    %v1473 = vunpack.c.0.s8 %v1472
    %v1474 = vlaneseq
    %v1475 = vshrl.u32 %v1474, 7
    %v1476 = vsub.s32 %v1473, %v1475
    %v1477 = vrot.slane %v1470, %v1476
    %v1478 = vcombine.low %v1262, %v1263
    %v1480 = vunpack.c.l.s4 1983009808
    %v1481 = vunpack.c.0.s8 %v1480
    %v1482 = vlaneseq
    %v1483 = vshrl.u32 %v1482, 7
    %v1484 = vsub.s32 %v1481, %v1483
    %v1485 = vrot.slane %v1478, %v1484
    %v1486 = vcombine.low %v1254, %v1261
    %v1488 = vunpack.c.l.s4 1983009808
    %v1489 = vunpack.c.0.s8 %v1488
    %v1490 = vlaneseq
    %v1491 = vshrl.u32 %v1490, 7
    %v1492 = vsub.s32 %v1489, %v1491
    %v1493 = vrot.slane %v1486, %v1492
    %v1494 = vcombine.low %v1264, %v1265
    %v1496 = vunpack.c.l.s4 1983009808
    %v1497 = vunpack.c.0.s8 %v1496
    %v1498 = vlaneseq
    %v1499 = vshrl.u32 %v1498, 7
    %v1500 = vsub.s32 %v1497, %v1499
    %v1501 = vrot.slane %v1494, %v1500
    %v1502 = vcombine.low %v1477, %v1485
    %v1503 = vcombine.high %v1477, %v1485
    %v1505 = vunpack.c.l.s4 1934713408
    %v1506 = vunpack.c.0.s8 %v1505
    %v1507 = vlaneseq
    %v1508 = vshrl.u32 %v1507, 7
    %v1509 = vsub.s32 %v1506, %v1508
    %v1510 = vrot.slane %v1502, %v1509
    %v1512 = vunpack.c.l.s4 1934713408
    %v1513 = vunpack.c.0.s8 %v1512
    %v1514 = vlaneseq
    %v1515 = vshrl.u32 %v1514, 7
    %v1516 = vsub.s32 %v1513, %v1515
    %v1517 = vrot.slane %v1503, %v1516
    %v1518 = vcombine.low %v1493, %v1501
    %v1519 = vcombine.high %v1493, %v1501
    %v1521 = vunpack.c.l.s4 1934713408
    %v1522 = vunpack.c.0.s8 %v1521
    %v1523 = vlaneseq
    %v1524 = vshrl.u32 %v1523, 7
    %v1525 = vsub.s32 %v1522, %v1524
    %v1526 = vrot.slane %v1518, %v1525
    %v1528 = vunpack.c.l.s4 1934713408
    %v1529 = vunpack.c.0.s8 %v1528
    %v1530 = vlaneseq
    %v1531 = vshrl.u32 %v1530, 7
    %v1532 = vsub.s32 %v1529, %v1531
    %v1533 = vrot.slane %v1519, %v1532
    %v1534 = vcombine.low %v1510, %v1526
    %v1535 = vcombine.high %v1510, %v1526
    %v1536 = vcombine.low %v1517, %v1533
    %v1537 = vcombine.high %v1517, %v1533
    %v1538 = vcombine.low %v1306, %v1313
    %v1540 = vunpack.c.l.s4 1983009808
    %v1541 = vunpack.c.0.s8 %v1540
    %v1542 = vlaneseq
    %v1543 = vshrl.u32 %v1542, 7
    %v1544 = vsub.s32 %v1541, %v1543
    %v1545 = vrot.slane %v1538, %v1544
    %v1546 = vcombine.low %v1330, %v1331
    %v1548 = vunpack.c.l.s4 1983009808
    %v1549 = vunpack.c.0.s8 %v1548
    %v1550 = vlaneseq
    %v1551 = vshrl.u32 %v1550, 7
    %v1552 = vsub.s32 %v1549, %v1551
    %v1553 = vrot.slane %v1546, %v1552
    %v1554 = vcombine.low %v1322, %v1329
    %v1556 = vunpack.c.l.s4 1983009808
    %v1557 = vunpack.c.0.s8 %v1556
    %v1558 = vlaneseq
    %v1559 = vshrl.u32 %v1558, 7
    %v1560 = vsub.s32 %v1557, %v1559
    %v1561 = vrot.slane %v1554, %v1560
    %v1562 = vcombine.low %v1332, %v1333
    %v1564 = vunpack.c.l.s4 1983009808
    %v1565 = vunpack.c.0.s8 %v1564
    %v1566 = vlaneseq
    %v1567 = vshrl.u32 %v1566, 7
    %v1568 = vsub.s32 %v1565, %v1567
    %v1569 = vrot.slane %v1562, %v1568
    %v1570 = vcombine.low %v1545, %v1553
    %v1571 = vcombine.high %v1545, %v1553
    %v1573 = vunpack.c.l.s4 1934713408
    %v1574 = vunpack.c.0.s8 %v1573
    %v1575 = vlaneseq
    %v1576 = vshrl.u32 %v1575, 7
    %v1577 = vsub.s32 %v1574, %v1576
    %v1578 = vrot.slane %v1570, %v1577
    %v1580 = vunpack.c.l.s4 1934713408
    %v1581 = vunpack.c.0.s8 %v1580
    %v1582 = vlaneseq
    %v1583 = vshrl.u32 %v1582, 7
    %v1584 = vsub.s32 %v1581, %v1583
    %v1585 = vrot.slane %v1571, %v1584
    %v1586 = vcombine.low %v1561, %v1569
    %v1587 = vcombine.high %v1561, %v1569
    %v1589 = vunpack.c.l.s4 1934713408
    %v1590 = vunpack.c.0.s8 %v1589
    %v1591 = vlaneseq
    %v1592 = vshrl.u32 %v1591, 7
    %v1593 = vsub.s32 %v1590, %v1592
    %v1594 = vrot.slane %v1586, %v1593
    %v1596 = vunpack.c.l.s4 1934713408
    %v1597 = vunpack.c.0.s8 %v1596
    %v1598 = vlaneseq
    %v1599 = vshrl.u32 %v1598, 7
    %v1600 = vsub.s32 %v1597, %v1599
    %v1601 = vrot.slane %v1587, %v1600
    %v1602 = vcombine.low %v1578, %v1594
    %v1603 = vcombine.high %v1578, %v1594
    %v1604 = vcombine.low %v1585, %v1601
    %v1605 = vcombine.high %v1585, %v1601
    %v1606 = vcombine.low %v1374, %v1381
    %v1608 = vunpack.c.l.s4 1983009808
    %v1609 = vunpack.c.0.s8 %v1608
    %v1610 = vlaneseq
    %v1611 = vshrl.u32 %v1610, 7
    %v1612 = vsub.s32 %v1609, %v1611
    %v1613 = vrot.slane %v1606, %v1612
    %v1614 = vcombine.low %v1398, %v1399
    %v1616 = vunpack.c.l.s4 1983009808
    %v1617 = vunpack.c.0.s8 %v1616
    %v1618 = vlaneseq
    %v1619 = vshrl.u32 %v1618, 7
    %v1620 = vsub.s32 %v1617, %v1619
    %v1621 = vrot.slane %v1614, %v1620
    %v1622 = vcombine.low %v1390, %v1397
    %v1624 = vunpack.c.l.s4 1983009808
    %v1625 = vunpack.c.0.s8 %v1624
    %v1626 = vlaneseq
    %v1627 = vshrl.u32 %v1626, 7
    %v1628 = vsub.s32 %v1625, %v1627
    %v1629 = vrot.slane %v1622, %v1628
    %v1630 = vcombine.low %v1400, %v1401
    %v1632 = vunpack.c.l.s4 1983009808
    %v1633 = vunpack.c.0.s8 %v1632
    %v1634 = vlaneseq
    %v1635 = vshrl.u32 %v1634, 7
    %v1636 = vsub.s32 %v1633, %v1635
    %v1637 = vrot.slane %v1630, %v1636
    %v1638 = vcombine.low %v1613, %v1621
    %v1639 = vcombine.high %v1613, %v1621
    %v1641 = vunpack.c.l.s4 1934713408
    %v1642 = vunpack.c.0.s8 %v1641
    %v1643 = vlaneseq
    %v1644 = vshrl.u32 %v1643, 7
    %v1645 = vsub.s32 %v1642, %v1644
    %v1646 = vrot.slane %v1638, %v1645
    %v1648 = vunpack.c.l.s4 1934713408
    %v1649 = vunpack.c.0.s8 %v1648
    %v1650 = vlaneseq
    %v1651 = vshrl.u32 %v1650, 7
    %v1652 = vsub.s32 %v1649, %v1651
    %v1653 = vrot.slane %v1639, %v1652
    %v1654 = vcombine.low %v1629, %v1637
    %v1655 = vcombine.high %v1629, %v1637
    %v1657 = vunpack.c.l.s4 1934713408
    %v1658 = vunpack.c.0.s8 %v1657
    %v1659 = vlaneseq
    %v1660 = vshrl.u32 %v1659, 7
    %v1661 = vsub.s32 %v1658, %v1660
    %v1662 = vrot.slane %v1654, %v1661
    %v1664 = vunpack.c.l.s4 1934713408
    %v1665 = vunpack.c.0.s8 %v1664
    %v1666 = vlaneseq
    %v1667 = vshrl.u32 %v1666, 7
    %v1668 = vsub.s32 %v1665, %v1667
    %v1669 = vrot.slane %v1655, %v1668
    %v1670 = vcombine.low %v1646, %v1662
    %v1671 = vcombine.high %v1646, %v1662
    %v1672 = vcombine.low %v1653, %v1669
    %v1673 = vcombine.high %v1653, %v1669
    %v1674 = vcombine.low %v1442, %v1449
    %v1676 = vunpack.c.l.s4 1983009808
    %v1677 = vunpack.c.0.s8 %v1676
    %v1678 = vlaneseq
    %v1679 = vshrl.u32 %v1678, 7
    %v1680 = vsub.s32 %v1677, %v1679
    %v1681 = vrot.slane %v1674, %v1680
    %v1682 = vcombine.low %v1466, %v1467
    %v1684 = vunpack.c.l.s4 1983009808
    %v1685 = vunpack.c.0.s8 %v1684
    %v1686 = vlaneseq
    %v1687 = vshrl.u32 %v1686, 7
    %v1688 = vsub.s32 %v1685, %v1687
    %v1689 = vrot.slane %v1682, %v1688
    %v1690 = vcombine.low %v1458, %v1465
    %v1692 = vunpack.c.l.s4 1983009808
    %v1693 = vunpack.c.0.s8 %v1692
    %v1694 = vlaneseq
    %v1695 = vshrl.u32 %v1694, 7
    %v1696 = vsub.s32 %v1693, %v1695
    %v1697 = vrot.slane %v1690, %v1696
    %v1698 = vcombine.low %v1468, %v1469
    %v1700 = vunpack.c.l.s4 1983009808
    %v1701 = vunpack.c.0.s8 %v1700
    %v1702 = vlaneseq
    %v1703 = vshrl.u32 %v1702, 7
    %v1704 = vsub.s32 %v1701, %v1703
    %v1705 = vrot.slane %v1698, %v1704
    %v1706 = vcombine.low %v1681, %v1689
    %v1707 = vcombine.high %v1681, %v1689
    %v1709 = vunpack.c.l.s4 1934713408
    %v1710 = vunpack.c.0.s8 %v1709
    %v1711 = vlaneseq
    %v1712 = vshrl.u32 %v1711, 7
    %v1713 = vsub.s32 %v1710, %v1712
    %v1714 = vrot.slane %v1706, %v1713
    %v1716 = vunpack.c.l.s4 1934713408
    %v1717 = vunpack.c.0.s8 %v1716
    %v1718 = vlaneseq
    %v1719 = vshrl.u32 %v1718, 7
    %v1720 = vsub.s32 %v1717, %v1719
    %v1721 = vrot.slane %v1707, %v1720
    %v1722 = vcombine.low %v1697, %v1705
    %v1723 = vcombine.high %v1697, %v1705
    %v1725 = vunpack.c.l.s4 1934713408
    %v1726 = vunpack.c.0.s8 %v1725
    %v1727 = vlaneseq
    %v1728 = vshrl.u32 %v1727, 7
    %v1729 = vsub.s32 %v1726, %v1728
    %v1730 = vrot.slane %v1722, %v1729
    %v1732 = vunpack.c.l.s4 1934713408
    %v1733 = vunpack.c.0.s8 %v1732
    %v1734 = vlaneseq
    %v1735 = vshrl.u32 %v1734, 7
    %v1736 = vsub.s32 %v1733, %v1735
    %v1737 = vrot.slane %v1723, %v1736
    %v1738 = vcombine.low %v1714, %v1730
    %v1739 = vcombine.high %v1714, %v1730
    %v1740 = vcombine.low %v1721, %v1737
    %v1741 = vcombine.high %v1721, %v1737
    %vm1742 = vcmask 64512
    %v1744 = vsel %vm1742, %v494, 0
    %v1747 = vsel %vm1742, %v942, 0
    %v1750 = vsel %vm1742, %v1010, 0
    %1752 = vmatprep.subr.mxu0 0.0
    %1753 = vmatpush1.xpose.msra.mxu0 0.0
    %1754 = vmatprep.subr.mxu0 0.0
    %1755 = vmatpush1.xpose.msra.mxu0 0.0
    %1756 = vmatprep.subr.mxu0 0.0
    %1757 = vmatpush1.xpose.msra.mxu0 0.0
    %1758 = vmatprep.subr.mxu0 0.0
    %1759 = vmatpush1.xpose.msra.mxu0 0.0
    %1760 = vmatprep.subr.mxu0 0.0
    %1761 = vmatpush1.xpose.msra.mxu0 0.0
    %1762 = vmatprep.subr.mxu0 0.0
    %1763 = vmatpush1.xpose.msra.mxu0 0.0
    %1764 = vmatprep.subr.mxu0 0.0
    %1765 = vmatpush1.xpose.msra.mxu0 0.0
    %1766 = vmatprep.subr.mxu0 0.0
    %1767 = vmatpush1.xpose.msra.mxu0 0.0
    %1768 = vmatprep.subr.mxu0 0.0
    %1769 = vmatpush1.xpose.msra.mxu0 0.0
    %1770 = vmatprep.subr.mxu0 0.0
    %1771 = vmatpush1.xpose.msra.mxu0 0.0
    %1772 = vmatprep.subr.mxu0 0.0
    %1773 = vmatpush1.xpose.msra.mxu0 0.0
    %1774 = vmatprep.subr.mxu0 0.0
    %1775 = vmatpush1.xpose.msra.mxu0 0.0
    %1776 = vmatprep.subr.mxu0 0.0
    %1777 = vmatpush1.xpose.msra.mxu0 0.0
    %1778 = vmatprep.subr.mxu0 0.0
    %1779 = vmatpush1.xpose.msra.mxu0 0.0
    %1780 = vmatprep.subr.mxu0 0.0
    %1781 = vmatpush1.xpose.msra.mxu0 %v1750
    %1782 = vmatprep.subr.mxu0 0.0
    %1783 = vmatpush1.xpose.msra.mxu0 %v1747
    %1784 = vmatprep.subr.mxu0 0.0
    %1785 = vmatpush2.xpose.msra.mxu0 0.0
    %1786 = vmatprep.subr.mxu0 0.0
    %1787 = vmatpush2.xpose.msra.mxu0 0.0
    %1788 = vmatprep.subr.mxu0 0.0
    %1789 = vmatpush2.xpose.msra.mxu0 0.0
    %1790 = vmatprep.subr.mxu0 0.0
    %1791 = vmatpush2.xpose.msra.mxu0 0.0
    %1792 = vmatprep.subr.mxu0 0.0
    %1793 = vmatpush2.xpose.msra.mxu0 0.0
    %1794 = vmatprep.subr.mxu0 0.0
    %1795 = vmatpush2.xpose.msra.mxu0 0.0
    %1796 = vmatprep.subr.mxu0 0.0
    %1797 = vmatpush2.xpose.msra.mxu0 0.0
    %1798 = vmatprep.subr.mxu0 0.0
    %1799 = vmatpush2.xpose.msra.mxu0 0.0
    %1800 = vmatprep.subr.mxu0 0.0
    %1801 = vmatpush2.xpose.msra.mxu0 0.0
    %1802 = vmatprep.subr.mxu0 0.0
    %1803 = vmatpush2.xpose.msra.mxu0 0.0
    %1804 = vmatprep.subr.mxu0 0.0
    %1805 = vmatpush2.xpose.msra.mxu0 0.0
    %1806 = vmatprep.subr.mxu0 0.0
    %1807 = vmatpush2.xpose.msra.mxu0 0.0
    %1808 = vmatprep.subr.mxu0 0.0
    %1809 = vmatpush2.xpose.msra.mxu0 0.0
    %1810 = vmatprep.subr.mxu0 0.0
    %1811 = vmatpush2.xpose.msra.mxu0 0.0
    %1812 = vmatprep.subr.mxu0 0.0
    %1813 = vmatpush2.xpose.msra.mxu0 0.0
    %1814 = vmatprep.subr.mxu0 0.0
    %1815 = vmatpush2.xpose.msra.mxu0 0.0
    %1816 = vmatprep.mubr.f32.mxu0 0.0
    %1817 = vmatmul.mubr.f32.gmra.mxu0 %v1744
    %v1818 = vpop.f32.mrf.mxu0
    %v1819 = vadd.f32 0.0, %v1818
    %v1820 = vpop.f32.mrf.mxu0
    %1821 = vdwg.mxu0
    %v1823 = vsel %vm1742, %v495, 0
    %v1826 = vsel %vm1742, %v943, 0
    %v1829 = vsel %vm1742, %v1011, 0
    %1831 = vmatprep.subr.mxu0 0.0
    %1832 = vmatpush1.xpose.msra.mxu0 0.0
    %1833 = vmatprep.subr.mxu0 0.0
    %1834 = vmatpush1.xpose.msra.mxu0 0.0
    %1835 = vmatprep.subr.mxu0 0.0
    %1836 = vmatpush1.xpose.msra.mxu0 0.0
    %1837 = vmatprep.subr.mxu0 0.0
    %1838 = vmatpush1.xpose.msra.mxu0 0.0
    %1839 = vmatprep.subr.mxu0 0.0
    %1840 = vmatpush1.xpose.msra.mxu0 0.0
    %1841 = vmatprep.subr.mxu0 0.0
    %1842 = vmatpush1.xpose.msra.mxu0 0.0
    %1843 = vmatprep.subr.mxu0 0.0
    %1844 = vmatpush1.xpose.msra.mxu0 0.0
    %1845 = vmatprep.subr.mxu0 0.0
    %1846 = vmatpush1.xpose.msra.mxu0 0.0
    %1847 = vmatprep.subr.mxu0 0.0
    %1848 = vmatpush1.xpose.msra.mxu0 0.0
    %1849 = vmatprep.subr.mxu0 0.0
    %1850 = vmatpush1.xpose.msra.mxu0 0.0
    %1851 = vmatprep.subr.mxu0 0.0
    %1852 = vmatpush1.xpose.msra.mxu0 0.0
    %1853 = vmatprep.subr.mxu0 0.0
    %1854 = vmatpush1.xpose.msra.mxu0 0.0
    %1855 = vmatprep.subr.mxu0 0.0
    %1856 = vmatpush1.xpose.msra.mxu0 0.0
    %1857 = vmatprep.subr.mxu0 0.0
    %1858 = vmatpush1.xpose.msra.mxu0 0.0
    %1859 = vmatprep.subr.mxu0 0.0
    %1860 = vmatpush1.xpose.msra.mxu0 %v1829
    %1861 = vmatprep.subr.mxu0 0.0
    %1862 = vmatpush1.xpose.msra.mxu0 %v1826
    %1863 = vmatprep.subr.mxu0 0.0
    %1864 = vmatpush2.xpose.msra.mxu0 0.0
    %1865 = vmatprep.subr.mxu0 0.0
    %1866 = vmatpush2.xpose.msra.mxu0 0.0
    %1867 = vmatprep.subr.mxu0 0.0
    %1868 = vmatpush2.xpose.msra.mxu0 0.0
    %1869 = vmatprep.subr.mxu0 0.0
    %1870 = vmatpush2.xpose.msra.mxu0 0.0
    %1871 = vmatprep.subr.mxu0 0.0
    %1872 = vmatpush2.xpose.msra.mxu0 0.0
    %1873 = vmatprep.subr.mxu0 0.0
    %1874 = vmatpush2.xpose.msra.mxu0 0.0
    %1875 = vmatprep.subr.mxu0 0.0
    %1876 = vmatpush2.xpose.msra.mxu0 0.0
    %1877 = vmatprep.subr.mxu0 0.0
    %1878 = vmatpush2.xpose.msra.mxu0 0.0
    %1879 = vmatprep.subr.mxu0 0.0
    %1880 = vmatpush2.xpose.msra.mxu0 0.0
    %1881 = vmatprep.subr.mxu0 0.0
    %1882 = vmatpush2.xpose.msra.mxu0 0.0
    %1883 = vmatprep.subr.mxu0 0.0
    %1884 = vmatpush2.xpose.msra.mxu0 0.0
    %1885 = vmatprep.subr.mxu0 0.0
    %1886 = vmatpush2.xpose.msra.mxu0 0.0
    %1887 = vmatprep.subr.mxu0 0.0
    %1888 = vmatpush2.xpose.msra.mxu0 0.0
    %1889 = vmatprep.subr.mxu0 0.0
    %1890 = vmatpush2.xpose.msra.mxu0 0.0
    %1891 = vmatprep.subr.mxu0 0.0
    %1892 = vmatpush2.xpose.msra.mxu0 0.0
    %1893 = vmatprep.subr.mxu0 0.0
    %1894 = vmatpush2.xpose.msra.mxu0 0.0
    %1895 = vmatprep.mubr.f32.mxu0 0.0
    %1896 = vmatmul.mubr.f32.gmra.mxu0 %v1823
    %v1897 = vpop.f32.mrf.mxu0
    %v1898 = vadd.f32 0.0, %v1897
    %v1899 = vpop.f32.mrf.mxu0
    %1900 = vdwg.mxu0
    %v1902 = vsel %vm1742, %v496, 0
    %v1905 = vsel %vm1742, %v944, 0
    %v1908 = vsel %vm1742, %v1012, 0
    %1910 = vmatprep.subr.mxu0 0.0
    %1911 = vmatpush1.xpose.msra.mxu0 0.0
    %1912 = vmatprep.subr.mxu0 0.0
    %1913 = vmatpush1.xpose.msra.mxu0 0.0
    %1914 = vmatprep.subr.mxu0 0.0
    %1915 = vmatpush1.xpose.msra.mxu0 0.0
    %1916 = vmatprep.subr.mxu0 0.0
    %1917 = vmatpush1.xpose.msra.mxu0 0.0
    %1918 = vmatprep.subr.mxu0 0.0
    %1919 = vmatpush1.xpose.msra.mxu0 0.0
    %1920 = vmatprep.subr.mxu0 0.0
    %1921 = vmatpush1.xpose.msra.mxu0 0.0
    %1922 = vmatprep.subr.mxu0 0.0
    %1923 = vmatpush1.xpose.msra.mxu0 0.0
    %1924 = vmatprep.subr.mxu0 0.0
    %1925 = vmatpush1.xpose.msra.mxu0 0.0
    %1926 = vmatprep.subr.mxu0 0.0
    %1927 = vmatpush1.xpose.msra.mxu0 0.0
    %1928 = vmatprep.subr.mxu0 0.0
    %1929 = vmatpush1.xpose.msra.mxu0 0.0
    %1930 = vmatprep.subr.mxu0 0.0
    %1931 = vmatpush1.xpose.msra.mxu0 0.0
    %1932 = vmatprep.subr.mxu0 0.0
    %1933 = vmatpush1.xpose.msra.mxu0 0.0
    %1934 = vmatprep.subr.mxu0 0.0
    %1935 = vmatpush1.xpose.msra.mxu0 0.0
    %1936 = vmatprep.subr.mxu0 0.0
    %1937 = vmatpush1.xpose.msra.mxu0 0.0
    %1938 = vmatprep.subr.mxu0 0.0
    %1939 = vmatpush1.xpose.msra.mxu0 %v1908
    %1940 = vmatprep.subr.mxu0 0.0
    %1941 = vmatpush1.xpose.msra.mxu0 %v1905
    %1942 = vmatprep.subr.mxu0 0.0
    %1943 = vmatpush2.xpose.msra.mxu0 0.0
    %1944 = vmatprep.subr.mxu0 0.0
    %1945 = vmatpush2.xpose.msra.mxu0 0.0
    %1946 = vmatprep.subr.mxu0 0.0
    %1947 = vmatpush2.xpose.msra.mxu0 0.0
    %1948 = vmatprep.subr.mxu0 0.0
    %1949 = vmatpush2.xpose.msra.mxu0 0.0
    %1950 = vmatprep.subr.mxu0 0.0
    %1951 = vmatpush2.xpose.msra.mxu0 0.0
    %1952 = vmatprep.subr.mxu0 0.0
    %1953 = vmatpush2.xpose.msra.mxu0 0.0
    %1954 = vmatprep.subr.mxu0 0.0
    %1955 = vmatpush2.xpose.msra.mxu0 0.0
    %1956 = vmatprep.subr.mxu0 0.0
    %1957 = vmatpush2.xpose.msra.mxu0 0.0
    %1958 = vmatprep.subr.mxu0 0.0
    %1959 = vmatpush2.xpose.msra.mxu0 0.0
    %1960 = vmatprep.subr.mxu0 0.0
    %1961 = vmatpush2.xpose.msra.mxu0 0.0
    %1962 = vmatprep.subr.mxu0 0.0
    %1963 = vmatpush2.xpose.msra.mxu0 0.0
    %1964 = vmatprep.subr.mxu0 0.0
    %1965 = vmatpush2.xpose.msra.mxu0 0.0
    %1966 = vmatprep.subr.mxu0 0.0
    %1967 = vmatpush2.xpose.msra.mxu0 0.0
    %1968 = vmatprep.subr.mxu0 0.0
    %1969 = vmatpush2.xpose.msra.mxu0 0.0
    %1970 = vmatprep.subr.mxu0 0.0
    %1971 = vmatpush2.xpose.msra.mxu0 0.0
    %1972 = vmatprep.subr.mxu0 0.0
    %1973 = vmatpush2.xpose.msra.mxu0 0.0
    %1974 = vmatprep.mubr.f32.mxu0 0.0
    %1975 = vmatmul.mubr.f32.gmra.mxu0 %v1902
    %v1976 = vpop.f32.mrf.mxu0
    %v1977 = vadd.f32 0.0, %v1976
    %v1978 = vpop.f32.mrf.mxu0
    %1979 = vdwg.mxu0
    %v1981 = vsel %vm1742, %v497, 0
    %v1984 = vsel %vm1742, %v945, 0
    %v1987 = vsel %vm1742, %v1013, 0
    %1989 = vmatprep.subr.mxu0 0.0
    %1990 = vmatpush1.xpose.msra.mxu0 0.0
    %1991 = vmatprep.subr.mxu0 0.0
    %1992 = vmatpush1.xpose.msra.mxu0 0.0
    %1993 = vmatprep.subr.mxu0 0.0
    %1994 = vmatpush1.xpose.msra.mxu0 0.0
    %1995 = vmatprep.subr.mxu0 0.0
    %1996 = vmatpush1.xpose.msra.mxu0 0.0
    %1997 = vmatprep.subr.mxu0 0.0
    %1998 = vmatpush1.xpose.msra.mxu0 0.0
    %1999 = vmatprep.subr.mxu0 0.0
    %2000 = vmatpush1.xpose.msra.mxu0 0.0
    %2001 = vmatprep.subr.mxu0 0.0
    %2002 = vmatpush1.xpose.msra.mxu0 0.0
    %2003 = vmatprep.subr.mxu0 0.0
    %2004 = vmatpush1.xpose.msra.mxu0 0.0
    %2005 = vmatprep.subr.mxu0 0.0
    %2006 = vmatpush1.xpose.msra.mxu0 0.0
    %2007 = vmatprep.subr.mxu0 0.0
    %2008 = vmatpush1.xpose.msra.mxu0 0.0
    %2009 = vmatprep.subr.mxu0 0.0
    %2010 = vmatpush1.xpose.msra.mxu0 0.0
    %2011 = vmatprep.subr.mxu0 0.0
    %2012 = vmatpush1.xpose.msra.mxu0 0.0
    %2013 = vmatprep.subr.mxu0 0.0
    %2014 = vmatpush1.xpose.msra.mxu0 0.0
    %2015 = vmatprep.subr.mxu0 0.0
    %2016 = vmatpush1.xpose.msra.mxu0 0.0
    %2017 = vmatprep.subr.mxu0 0.0
    %2018 = vmatpush1.xpose.msra.mxu0 %v1987
    %2019 = vmatprep.subr.mxu0 0.0
    %2020 = vmatpush1.xpose.msra.mxu0 %v1984
    %2021 = vmatprep.subr.mxu0 0.0
    %2022 = vmatpush2.xpose.msra.mxu0 0.0
    %2023 = vmatprep.subr.mxu0 0.0
    %2024 = vmatpush2.xpose.msra.mxu0 0.0
    %2025 = vmatprep.subr.mxu0 0.0
    %2026 = vmatpush2.xpose.msra.mxu0 0.0
    %2027 = vmatprep.subr.mxu0 0.0
    %2028 = vmatpush2.xpose.msra.mxu0 0.0
    %2029 = vmatprep.subr.mxu0 0.0
    %2030 = vmatpush2.xpose.msra.mxu0 0.0
    %2031 = vmatprep.subr.mxu0 0.0
    %2032 = vmatpush2.xpose.msra.mxu0 0.0
    %2033 = vmatprep.subr.mxu0 0.0
    %2034 = vmatpush2.xpose.msra.mxu0 0.0
    %2035 = vmatprep.subr.mxu0 0.0
    %2036 = vmatpush2.xpose.msra.mxu0 0.0
    %2037 = vmatprep.subr.mxu0 0.0
    %2038 = vmatpush2.xpose.msra.mxu0 0.0
    %2039 = vmatprep.subr.mxu0 0.0
    %2040 = vmatpush2.xpose.msra.mxu0 0.0
    %2041 = vmatprep.subr.mxu0 0.0
    %2042 = vmatpush2.xpose.msra.mxu0 0.0
    %2043 = vmatprep.subr.mxu0 0.0
    %2044 = vmatpush2.xpose.msra.mxu0 0.0
    %2045 = vmatprep.subr.mxu0 0.0
    %2046 = vmatpush2.xpose.msra.mxu0 0.0
    %2047 = vmatprep.subr.mxu0 0.0
    %2048 = vmatpush2.xpose.msra.mxu0 0.0
    %2049 = vmatprep.subr.mxu0 0.0
    %2050 = vmatpush2.xpose.msra.mxu0 0.0
    %2051 = vmatprep.subr.mxu0 0.0
    %2052 = vmatpush2.xpose.msra.mxu0 0.0
    %2053 = vmatprep.mubr.f32.mxu0 0.0
    %2054 = vmatmul.mubr.f32.gmra.mxu0 %v1981
    %v2055 = vpop.f32.mrf.mxu0
    %v2056 = vadd.f32 0.0, %v2055
    %v2057 = vpop.f32.mrf.mxu0
    %2058 = vdwg.mxu0
    %v2060 = vsel %vm1742, %v562, 0
    %v2063 = vsel %vm1742, %v1078, 0
    %v2066 = vsel %vm1742, %v1146, 0
    %2068 = vmatprep.subr.mxu0 0.0
    %2069 = vmatpush1.xpose.msra.mxu0 0.0
    %2070 = vmatprep.subr.mxu0 0.0
    %2071 = vmatpush1.xpose.msra.mxu0 0.0
    %2072 = vmatprep.subr.mxu0 0.0
    %2073 = vmatpush1.xpose.msra.mxu0 0.0
    %2074 = vmatprep.subr.mxu0 0.0
    %2075 = vmatpush1.xpose.msra.mxu0 0.0
    %2076 = vmatprep.subr.mxu0 0.0
    %2077 = vmatpush1.xpose.msra.mxu0 0.0
    %2078 = vmatprep.subr.mxu0 0.0
    %2079 = vmatpush1.xpose.msra.mxu0 0.0
    %2080 = vmatprep.subr.mxu0 0.0
    %2081 = vmatpush1.xpose.msra.mxu0 0.0
    %2082 = vmatprep.subr.mxu0 0.0
    %2083 = vmatpush1.xpose.msra.mxu0 0.0
    %2084 = vmatprep.subr.mxu0 0.0
    %2085 = vmatpush1.xpose.msra.mxu0 0.0
    %2086 = vmatprep.subr.mxu0 0.0
    %2087 = vmatpush1.xpose.msra.mxu0 0.0
    %2088 = vmatprep.subr.mxu0 0.0
    %2089 = vmatpush1.xpose.msra.mxu0 0.0
    %2090 = vmatprep.subr.mxu0 0.0
    %2091 = vmatpush1.xpose.msra.mxu0 0.0
    %2092 = vmatprep.subr.mxu0 0.0
    %2093 = vmatpush1.xpose.msra.mxu0 0.0
    %2094 = vmatprep.subr.mxu0 0.0
    %2095 = vmatpush1.xpose.msra.mxu0 0.0
    %2096 = vmatprep.subr.mxu0 0.0
    %2097 = vmatpush1.xpose.msra.mxu0 %v2066
    %2098 = vmatprep.subr.mxu0 0.0
    %2099 = vmatpush1.xpose.msra.mxu0 %v2063
    %2100 = vmatprep.subr.mxu0 0.0
    %2101 = vmatpush2.xpose.msra.mxu0 0.0
    %2102 = vmatprep.subr.mxu0 0.0
    %2103 = vmatpush2.xpose.msra.mxu0 0.0
    %2104 = vmatprep.subr.mxu0 0.0
    %2105 = vmatpush2.xpose.msra.mxu0 0.0
    %2106 = vmatprep.subr.mxu0 0.0
    %2107 = vmatpush2.xpose.msra.mxu0 0.0
    %2108 = vmatprep.subr.mxu0 0.0
    %2109 = vmatpush2.xpose.msra.mxu0 0.0
    %2110 = vmatprep.subr.mxu0 0.0
    %2111 = vmatpush2.xpose.msra.mxu0 0.0
    %2112 = vmatprep.subr.mxu0 0.0
    %2113 = vmatpush2.xpose.msra.mxu0 0.0
    %2114 = vmatprep.subr.mxu0 0.0
    %2115 = vmatpush2.xpose.msra.mxu0 0.0
    %2116 = vmatprep.subr.mxu0 0.0
    %2117 = vmatpush2.xpose.msra.mxu0 0.0
    %2118 = vmatprep.subr.mxu0 0.0
    %2119 = vmatpush2.xpose.msra.mxu0 0.0
    %2120 = vmatprep.subr.mxu0 0.0
    %2121 = vmatpush2.xpose.msra.mxu0 0.0
    %2122 = vmatprep.subr.mxu0 0.0
    %2123 = vmatpush2.xpose.msra.mxu0 0.0
    %2124 = vmatprep.subr.mxu0 0.0
    %2125 = vmatpush2.xpose.msra.mxu0 0.0
    %2126 = vmatprep.subr.mxu0 0.0
    %2127 = vmatpush2.xpose.msra.mxu0 0.0
    %2128 = vmatprep.subr.mxu0 0.0
    %2129 = vmatpush2.xpose.msra.mxu0 0.0
    %2130 = vmatprep.subr.mxu0 0.0
    %2131 = vmatpush2.xpose.msra.mxu0 0.0
    %2132 = vmatprep.mubr.f32.mxu0 0.0
    %2133 = vmatmul.mubr.f32.gmra.mxu0 %v2060
    %v2134 = vpop.f32.mrf.mxu0
    %v2135 = vadd.f32 0.0, %v2134
    %v2136 = vpop.f32.mrf.mxu0
    %2137 = vdwg.mxu0
    %v2139 = vsel %vm1742, %v563, 0
    %v2142 = vsel %vm1742, %v1079, 0
    %v2145 = vsel %vm1742, %v1147, 0
    %2147 = vmatprep.subr.mxu0 0.0
    %2148 = vmatpush1.xpose.msra.mxu0 0.0
    %2149 = vmatprep.subr.mxu0 0.0
    %2150 = vmatpush1.xpose.msra.mxu0 0.0
    %2151 = vmatprep.subr.mxu0 0.0
    %2152 = vmatpush1.xpose.msra.mxu0 0.0
    %2153 = vmatprep.subr.mxu0 0.0
    %2154 = vmatpush1.xpose.msra.mxu0 0.0
    %2155 = vmatprep.subr.mxu0 0.0
    %2156 = vmatpush1.xpose.msra.mxu0 0.0
    %2157 = vmatprep.subr.mxu0 0.0
    %2158 = vmatpush1.xpose.msra.mxu0 0.0
    %2159 = vmatprep.subr.mxu0 0.0
    %2160 = vmatpush1.xpose.msra.mxu0 0.0
    %2161 = vmatprep.subr.mxu0 0.0
    %2162 = vmatpush1.xpose.msra.mxu0 0.0
    %2163 = vmatprep.subr.mxu0 0.0
    %2164 = vmatpush1.xpose.msra.mxu0 0.0
    %2165 = vmatprep.subr.mxu0 0.0
    %2166 = vmatpush1.xpose.msra.mxu0 0.0
    %2167 = vmatprep.subr.mxu0 0.0
    %2168 = vmatpush1.xpose.msra.mxu0 0.0
    %2169 = vmatprep.subr.mxu0 0.0
    %2170 = vmatpush1.xpose.msra.mxu0 0.0
    %2171 = vmatprep.subr.mxu0 0.0
    %2172 = vmatpush1.xpose.msra.mxu0 0.0
    %2173 = vmatprep.subr.mxu0 0.0
    %2174 = vmatpush1.xpose.msra.mxu0 0.0
    %2175 = vmatprep.subr.mxu0 0.0
    %2176 = vmatpush1.xpose.msra.mxu0 %v2145
    %2177 = vmatprep.subr.mxu0 0.0
    %2178 = vmatpush1.xpose.msra.mxu0 %v2142
    %2179 = vmatprep.subr.mxu0 0.0
    %2180 = vmatpush2.xpose.msra.mxu0 0.0
    %2181 = vmatprep.subr.mxu0 0.0
    %2182 = vmatpush2.xpose.msra.mxu0 0.0
    %2183 = vmatprep.subr.mxu0 0.0
    %2184 = vmatpush2.xpose.msra.mxu0 0.0
    %2185 = vmatprep.subr.mxu0 0.0
    %2186 = vmatpush2.xpose.msra.mxu0 0.0
    %2187 = vmatprep.subr.mxu0 0.0
    %2188 = vmatpush2.xpose.msra.mxu0 0.0
    %2189 = vmatprep.subr.mxu0 0.0
    %2190 = vmatpush2.xpose.msra.mxu0 0.0
    %2191 = vmatprep.subr.mxu0 0.0
    %2192 = vmatpush2.xpose.msra.mxu0 0.0
    %2193 = vmatprep.subr.mxu0 0.0
    %2194 = vmatpush2.xpose.msra.mxu0 0.0
    %2195 = vmatprep.subr.mxu0 0.0
    %2196 = vmatpush2.xpose.msra.mxu0 0.0
    %2197 = vmatprep.subr.mxu0 0.0
    %2198 = vmatpush2.xpose.msra.mxu0 0.0
    %2199 = vmatprep.subr.mxu0 0.0
    %2200 = vmatpush2.xpose.msra.mxu0 0.0
    %2201 = vmatprep.subr.mxu0 0.0
    %2202 = vmatpush2.xpose.msra.mxu0 0.0
    %2203 = vmatprep.subr.mxu0 0.0
    %2204 = vmatpush2.xpose.msra.mxu0 0.0
    %2205 = vmatprep.subr.mxu0 0.0
    %2206 = vmatpush2.xpose.msra.mxu0 0.0
    %2207 = vmatprep.subr.mxu0 0.0
    %2208 = vmatpush2.xpose.msra.mxu0 0.0
    %2209 = vmatprep.subr.mxu0 0.0
    %2210 = vmatpush2.xpose.msra.mxu0 0.0
    %2211 = vmatprep.mubr.f32.mxu0 0.0
    %2212 = vmatmul.mubr.f32.gmra.mxu0 %v2139
    %v2213 = vpop.f32.mrf.mxu0
    %v2214 = vadd.f32 0.0, %v2213
    %v2215 = vpop.f32.mrf.mxu0
    %2216 = vdwg.mxu0
    %v2218 = vsel %vm1742, %v564, 0
    %v2221 = vsel %vm1742, %v1080, 0
    %v2224 = vsel %vm1742, %v1148, 0
    %2226 = vmatprep.subr.mxu0 0.0
    %2227 = vmatpush1.xpose.msra.mxu0 0.0
    %2228 = vmatprep.subr.mxu0 0.0
    %2229 = vmatpush1.xpose.msra.mxu0 0.0
    %2230 = vmatprep.subr.mxu0 0.0
    %2231 = vmatpush1.xpose.msra.mxu0 0.0
    %2232 = vmatprep.subr.mxu0 0.0
    %2233 = vmatpush1.xpose.msra.mxu0 0.0
    %2234 = vmatprep.subr.mxu0 0.0
    %2235 = vmatpush1.xpose.msra.mxu0 0.0
    %2236 = vmatprep.subr.mxu0 0.0
    %2237 = vmatpush1.xpose.msra.mxu0 0.0
    %2238 = vmatprep.subr.mxu0 0.0
    %2239 = vmatpush1.xpose.msra.mxu0 0.0
    %2240 = vmatprep.subr.mxu0 0.0
    %2241 = vmatpush1.xpose.msra.mxu0 0.0
    %2242 = vmatprep.subr.mxu0 0.0
    %2243 = vmatpush1.xpose.msra.mxu0 0.0
    %2244 = vmatprep.subr.mxu0 0.0
    %2245 = vmatpush1.xpose.msra.mxu0 0.0
    %2246 = vmatprep.subr.mxu0 0.0
    %2247 = vmatpush1.xpose.msra.mxu0 0.0
    %2248 = vmatprep.subr.mxu0 0.0
    %2249 = vmatpush1.xpose.msra.mxu0 0.0
    %2250 = vmatprep.subr.mxu0 0.0
    %2251 = vmatpush1.xpose.msra.mxu0 0.0
    %2252 = vmatprep.subr.mxu0 0.0
    %2253 = vmatpush1.xpose.msra.mxu0 0.0
    %2254 = vmatprep.subr.mxu0 0.0
    %2255 = vmatpush1.xpose.msra.mxu0 %v2224
    %2256 = vmatprep.subr.mxu0 0.0
    %2257 = vmatpush1.xpose.msra.mxu0 %v2221
    %2258 = vmatprep.subr.mxu0 0.0
    %2259 = vmatpush2.xpose.msra.mxu0 0.0
    %2260 = vmatprep.subr.mxu0 0.0
    %2261 = vmatpush2.xpose.msra.mxu0 0.0
    %2262 = vmatprep.subr.mxu0 0.0
    %2263 = vmatpush2.xpose.msra.mxu0 0.0
    %2264 = vmatprep.subr.mxu0 0.0
    %2265 = vmatpush2.xpose.msra.mxu0 0.0
    %2266 = vmatprep.subr.mxu0 0.0
    %2267 = vmatpush2.xpose.msra.mxu0 0.0
    %2268 = vmatprep.subr.mxu0 0.0
    %2269 = vmatpush2.xpose.msra.mxu0 0.0
    %2270 = vmatprep.subr.mxu0 0.0
    %2271 = vmatpush2.xpose.msra.mxu0 0.0
    %2272 = vmatprep.subr.mxu0 0.0
    %2273 = vmatpush2.xpose.msra.mxu0 0.0
    %2274 = vmatprep.subr.mxu0 0.0
    %2275 = vmatpush2.xpose.msra.mxu0 0.0
    %2276 = vmatprep.subr.mxu0 0.0
    %2277 = vmatpush2.xpose.msra.mxu0 0.0
    %2278 = vmatprep.subr.mxu0 0.0
    %2279 = vmatpush2.xpose.msra.mxu0 0.0
    %2280 = vmatprep.subr.mxu0 0.0
    %2281 = vmatpush2.xpose.msra.mxu0 0.0
    %2282 = vmatprep.subr.mxu0 0.0
    %2283 = vmatpush2.xpose.msra.mxu0 0.0
    %2284 = vmatprep.subr.mxu0 0.0
    %2285 = vmatpush2.xpose.msra.mxu0 0.0
    %2286 = vmatprep.subr.mxu0 0.0
    %2287 = vmatpush2.xpose.msra.mxu0 0.0
    %2288 = vmatprep.subr.mxu0 0.0
    %2289 = vmatpush2.xpose.msra.mxu0 0.0
    %2290 = vmatprep.mubr.f32.mxu0 0.0
    %2291 = vmatmul.mubr.f32.gmra.mxu0 %v2218
    %v2292 = vpop.f32.mrf.mxu0
    %v2293 = vadd.f32 0.0, %v2292
    %v2294 = vpop.f32.mrf.mxu0
    %2295 = vdwg.mxu0
    %v2297 = vsel %vm1742, %v565, 0
    %v2300 = vsel %vm1742, %v1081, 0
    %v2303 = vsel %vm1742, %v1149, 0
    %2305 = vmatprep.subr.mxu0 0.0
    %2306 = vmatpush1.xpose.msra.mxu0 0.0
    %2307 = vmatprep.subr.mxu0 0.0
    %2308 = vmatpush1.xpose.msra.mxu0 0.0
    %2309 = vmatprep.subr.mxu0 0.0
    %2310 = vmatpush1.xpose.msra.mxu0 0.0
    %2311 = vmatprep.subr.mxu0 0.0
    %2312 = vmatpush1.xpose.msra.mxu0 0.0
    %2313 = vmatprep.subr.mxu0 0.0
    %2314 = vmatpush1.xpose.msra.mxu0 0.0
    %2315 = vmatprep.subr.mxu0 0.0
    %2316 = vmatpush1.xpose.msra.mxu0 0.0
    %2317 = vmatprep.subr.mxu0 0.0
    %2318 = vmatpush1.xpose.msra.mxu0 0.0
    %2319 = vmatprep.subr.mxu0 0.0
    %2320 = vmatpush1.xpose.msra.mxu0 0.0
    %2321 = vmatprep.subr.mxu0 0.0
    %2322 = vmatpush1.xpose.msra.mxu0 0.0
    %2323 = vmatprep.subr.mxu0 0.0
    %2324 = vmatpush1.xpose.msra.mxu0 0.0
    %2325 = vmatprep.subr.mxu0 0.0
    %2326 = vmatpush1.xpose.msra.mxu0 0.0
    %2327 = vmatprep.subr.mxu0 0.0
    %2328 = vmatpush1.xpose.msra.mxu0 0.0
    %2329 = vmatprep.subr.mxu0 0.0
    %2330 = vmatpush1.xpose.msra.mxu0 0.0
    %2331 = vmatprep.subr.mxu0 0.0
    %2332 = vmatpush1.xpose.msra.mxu0 0.0
    %2333 = vmatprep.subr.mxu0 0.0
    %2334 = vmatpush1.xpose.msra.mxu0 %v2303
    %2335 = vmatprep.subr.mxu0 0.0
    %2336 = vmatpush1.xpose.msra.mxu0 %v2300
    %2337 = vmatprep.subr.mxu0 0.0
    %2338 = vmatpush2.xpose.msra.mxu0 0.0
    %2339 = vmatprep.subr.mxu0 0.0
    %2340 = vmatpush2.xpose.msra.mxu0 0.0
    %2341 = vmatprep.subr.mxu0 0.0
    %2342 = vmatpush2.xpose.msra.mxu0 0.0
    %2343 = vmatprep.subr.mxu0 0.0
    %2344 = vmatpush2.xpose.msra.mxu0 0.0
    %2345 = vmatprep.subr.mxu0 0.0
    %2346 = vmatpush2.xpose.msra.mxu0 0.0
    %2347 = vmatprep.subr.mxu0 0.0
    %2348 = vmatpush2.xpose.msra.mxu0 0.0
    %2349 = vmatprep.subr.mxu0 0.0
    %2350 = vmatpush2.xpose.msra.mxu0 0.0
    %2351 = vmatprep.subr.mxu0 0.0
    %2352 = vmatpush2.xpose.msra.mxu0 0.0
    %2353 = vmatprep.subr.mxu0 0.0
    %2354 = vmatpush2.xpose.msra.mxu0 0.0
    %2355 = vmatprep.subr.mxu0 0.0
    %2356 = vmatpush2.xpose.msra.mxu0 0.0
    %2357 = vmatprep.subr.mxu0 0.0
    %2358 = vmatpush2.xpose.msra.mxu0 0.0
    %2359 = vmatprep.subr.mxu0 0.0
    %2360 = vmatpush2.xpose.msra.mxu0 0.0
    %2361 = vmatprep.subr.mxu0 0.0
    %2362 = vmatpush2.xpose.msra.mxu0 0.0
    %2363 = vmatprep.subr.mxu0 0.0
    %2364 = vmatpush2.xpose.msra.mxu0 0.0
    %2365 = vmatprep.subr.mxu0 0.0
    %2366 = vmatpush2.xpose.msra.mxu0 0.0
    %2367 = vmatprep.subr.mxu0 0.0
    %2368 = vmatpush2.xpose.msra.mxu0 0.0
    %2369 = vmatprep.mubr.f32.mxu0 0.0
    %2370 = vmatmul.mubr.f32.gmra.mxu0 %v2297
    %v2371 = vpop.f32.mrf.mxu0
    %v2372 = vadd.f32 0.0, %v2371
    %v2373 = vpop.f32.mrf.mxu0
    %2374 = vdwg.mxu0
    %v2375 = vld [vmem:[%s6] sm:$0x1]
    %v2376 = vld [vmem:[%s6 + $0x1] sm:$0x1]
    %v2379 = vlaneseq
    %v2380 = vshrl.u32 %v2379, 7
    %v2381 = vsub.s32 0, %v2380
    %v2382 = vrot.slane %v2375, %v2381
    %v2383 = vlaneseq
    %v2384 = vshrl.u32 %v2383, 7
    %v2385 = vsub.s32 0, %v2384
    %v2386 = vrot.slane %v2376, %v2385
    %v2389 = vadd.f32 %v1819, %v2382
    %v2390 = vadd.f32 %v1898, %v2382
    %v2391 = vadd.f32 %v1977, %v2382
    %v2392 = vadd.f32 %v2056, %v2382
    %v2393 = vadd.f32 %v2135, %v2386
    %v2394 = vadd.f32 %v2214, %v2386
    %v2395 = vadd.f32 %v2293, %v2386
    %v2396 = vadd.f32 %v2372, %v2386
    %vm2397 = vcmask 130048
    %v2398 = vsel %vm2397, %v2389, -inf
    %2399 = vmax.xlane.f32.xlu0 %v2398
    %v2400 = vpop.xlane.xlu0 %2399
    %v2401 = vsel %vm2397, %v2390, -inf
    %2402 = vmax.xlane.f32.xlu0 %v2401
    %v2403 = vpop.xlane.xlu0 %2402
    %v2404 = vsel %vm2397, %v2391, -inf
    %2405 = vmax.xlane.f32.xlu0 %v2404
    %v2406 = vpop.xlane.xlu0 %2405
    %v2407 = vsel %vm2397, %v2392, -inf
    %2408 = vmax.xlane.f32.xlu0 %v2407
    %v2409 = vpop.xlane.xlu0 %2408
    %v2410 = vsel %vm2397, %v2393, -inf
    %2411 = vmax.xlane.f32.xlu0 %v2410
    %v2412 = vpop.xlane.xlu0 %2411
    %v2413 = vsel %vm2397, %v2394, -inf
    %2414 = vmax.xlane.f32.xlu0 %v2413
    %v2415 = vpop.xlane.xlu0 %2414
    %v2416 = vsel %vm2397, %v2395, -inf
    %2417 = vmax.xlane.f32.xlu0 %v2416
    %v2418 = vpop.xlane.xlu0 %2417
    %v2419 = vsel %vm2397, %v2396, -inf
    %2420 = vmax.xlane.f32.xlu0 %v2419
    %v2421 = vpop.xlane.xlu0 %2420
    %v2422 = vsub.f32 %v2389, %v2400
    %v2423 = vsub.f32 %v2390, %v2403
    %v2424 = vsub.f32 %v2391, %v2406
    %v2425 = vsub.f32 %v2392, %v2409
    %v2426 = vsub.f32 %v2393, %v2412
    %v2427 = vsub.f32 %v2394, %v2415
    %v2428 = vsub.f32 %v2395, %v2418
    %v2429 = vsub.f32 %v2396, %v2421
    %v2430 = vmul.f32 %v2422, 1.442695
    %v2431 = vpow.pop %v2430
    %v2432 = vmul.f32 %v2423, 1.442695
    %v2433 = vpow.pop %v2432
    %v2434 = vmul.f32 %v2424, 1.442695
    %v2435 = vpow.pop %v2434
    %v2436 = vmul.f32 %v2425, 1.442695
    %v2437 = vpow.pop %v2436
    %v2438 = vmul.f32 %v2426, 1.442695
    %v2439 = vpow.pop %v2438
    %v2440 = vmul.f32 %v2427, 1.442695
    %v2441 = vpow.pop %v2440
    %v2442 = vmul.f32 %v2428, 1.442695
    %v2443 = vpow.pop %v2442
    %v2444 = vmul.f32 %v2429, 1.442695
    %v2445 = vpow.pop %v2444
    %v2446 = vsel %vm2397, %v2431, 0.0
    %2447 = vadd.xlane.f32.xlu0 %v2446
    %v2448 = vpop.xlane.xlu0 %2447
    %v2449 = vsel %vm2397, %v2433, 0.0
    %2450 = vadd.xlane.f32.xlu0 %v2449
    %v2451 = vpop.xlane.xlu0 %2450
    %v2452 = vsel %vm2397, %v2435, 0.0
    %2453 = vadd.xlane.f32.xlu0 %v2452
    %v2454 = vpop.xlane.xlu0 %2453
    %v2455 = vsel %vm2397, %v2437, 0.0
    %2456 = vadd.xlane.f32.xlu0 %v2455
    %v2457 = vpop.xlane.xlu0 %2456
    %v2458 = vsel %vm2397, %v2439, 0.0
    %2459 = vadd.xlane.f32.xlu0 %v2458
    %v2460 = vpop.xlane.xlu0 %2459
    %v2461 = vsel %vm2397, %v2441, 0.0
    %2462 = vadd.xlane.f32.xlu0 %v2461
    %v2463 = vpop.xlane.xlu0 %2462
    %v2464 = vsel %vm2397, %v2443, 0.0
    %2465 = vadd.xlane.f32.xlu0 %v2464
    %v2466 = vpop.xlane.xlu0 %2465
    %v2467 = vsel %vm2397, %v2445, 0.0
    %2468 = vadd.xlane.f32.xlu0 %v2467
    %v2469 = vpop.xlane.xlu0 %2468
    %v2470 = vrcp.pop %v2448
    %v2471 = vmul.f32 %v2431, %v2470
    %v2472 = vrcp.pop %v2451
    %v2473 = vmul.f32 %v2433, %v2472
    %v2474 = vrcp.pop %v2454
    %v2475 = vmul.f32 %v2435, %v2474
    %v2476 = vrcp.pop %v2457
    %v2477 = vmul.f32 %v2437, %v2476
    %v2478 = vrcp.pop %v2460
    %v2479 = vmul.f32 %v2439, %v2478
    %v2480 = vrcp.pop %v2463
    %v2481 = vmul.f32 %v2441, %v2480
    %v2482 = vrcp.pop %v2466
    %v2483 = vmul.f32 %v2443, %v2482
    %v2484 = vrcp.pop %v2469
    %v2485 = vmul.f32 %v2445, %v2484
    %v2487 = vsel %vm2397, %v2471, 0
    %2489 = vmatprep.subr.mxu0 0.0
    %2490 = vmatpush1.msra.mxu0 0.0
    %2491 = vmatprep.subr.mxu0 0.0
    %2492 = vmatpush1.msra.mxu0 0.0
    %2493 = vmatprep.subr.mxu0 0.0
    %2494 = vmatpush1.msra.mxu0 0.0
    %2495 = vmatprep.subr.mxu0 0.0
    %2496 = vmatpush1.msra.mxu0 0.0
    %2497 = vmatprep.subr.mxu0 0.0
    %2498 = vmatpush1.msra.mxu0 0.0
    %2499 = vmatprep.subr.mxu0 0.0
    %2500 = vmatpush1.msra.mxu0 0.0
    %2501 = vmatprep.subr.mxu0 0.0
    %2502 = vmatpush1.msra.mxu0 0.0
    %2503 = vmatprep.subr.mxu0 0.0
    %2504 = vmatpush1.msra.mxu0 0.0
    %2505 = vmatprep.subr.mxu0 0.0
    %2506 = vmatpush1.msra.mxu0 0.0
    %2507 = vmatprep.subr.mxu0 0.0
    %2508 = vmatpush1.msra.mxu0 0.0
    %2509 = vmatprep.subr.mxu0 0.0
    %2510 = vmatpush1.msra.mxu0 0.0
    %2511 = vmatprep.subr.mxu0 0.0
    %2512 = vmatpush1.msra.mxu0 0.0
    %2513 = vmatprep.subr.mxu0 0.0
    %2514 = vmatpush1.msra.mxu0 0.0
    %2515 = vmatprep.subr.mxu0 0.0
    %2516 = vmatpush1.msra.mxu0 0.0
    %2517 = vmatprep.subr.mxu0 0.0
    %2518 = vmatpush1.msra.mxu0 %v1602
    %2519 = vmatprep.subr.mxu0 0.0
    %2520 = vmatpush1.msra.mxu0 %v1534
    %2521 = vmatprep.subr.mxu0 0.0
    %2522 = vmatpush2.msra.mxu0 0.0
    %2523 = vmatprep.subr.mxu0 0.0
    %2524 = vmatpush2.msra.mxu0 0.0
    %2525 = vmatprep.subr.mxu0 0.0
    %2526 = vmatpush2.msra.mxu0 0.0
    %2527 = vmatprep.subr.mxu0 0.0
    %2528 = vmatpush2.msra.mxu0 0.0
    %2529 = vmatprep.subr.mxu0 0.0
    %2530 = vmatpush2.msra.mxu0 0.0
    %2531 = vmatprep.subr.mxu0 0.0
    %2532 = vmatpush2.msra.mxu0 0.0
    %2533 = vmatprep.subr.mxu0 0.0
    %2534 = vmatpush2.msra.mxu0 0.0
    %2535 = vmatprep.subr.mxu0 0.0
    %2536 = vmatpush2.msra.mxu0 0.0
    %2537 = vmatprep.subr.mxu0 0.0
    %2538 = vmatpush2.msra.mxu0 0.0
    %2539 = vmatprep.subr.mxu0 0.0
    %2540 = vmatpush2.msra.mxu0 0.0
    %2541 = vmatprep.subr.mxu0 0.0
    %2542 = vmatpush2.msra.mxu0 0.0
    %2543 = vmatprep.subr.mxu0 0.0
    %2544 = vmatpush2.msra.mxu0 0.0
    %2545 = vmatprep.subr.mxu0 0.0
    %2546 = vmatpush2.msra.mxu0 0.0
    %2547 = vmatprep.subr.mxu0 0.0
    %2548 = vmatpush2.msra.mxu0 0.0
    %2549 = vmatprep.subr.mxu0 0.0
    %2550 = vmatpush2.msra.mxu0 0.0
    %2551 = vmatprep.subr.mxu0 0.0
    %2552 = vmatpush2.msra.mxu0 0.0
    %2553 = vmatprep.mubr.f32.mxu0 0.0
    %2554 = vmatmul.mubr.f32.gmra.mxu0 %v2487
    %v2555 = vpop.f32.mrf.mxu0
    %v2556 = vadd.f32 0.0, %v2555
    %v2557 = vpop.f32.mrf.mxu0
    %2558 = vdwg.mxu0
    %v2560 = vsel %vm2397, %v2473, 0
    %2562 = vmatprep.subr.mxu0 0.0
    %2563 = vmatpush1.msra.mxu0 0.0
    %2564 = vmatprep.subr.mxu0 0.0
    %2565 = vmatpush1.msra.mxu0 0.0
    %2566 = vmatprep.subr.mxu0 0.0
    %2567 = vmatpush1.msra.mxu0 0.0
    %2568 = vmatprep.subr.mxu0 0.0
    %2569 = vmatpush1.msra.mxu0 0.0
    %2570 = vmatprep.subr.mxu0 0.0
    %2571 = vmatpush1.msra.mxu0 0.0
    %2572 = vmatprep.subr.mxu0 0.0
    %2573 = vmatpush1.msra.mxu0 0.0
    %2574 = vmatprep.subr.mxu0 0.0
    %2575 = vmatpush1.msra.mxu0 0.0
    %2576 = vmatprep.subr.mxu0 0.0
    %2577 = vmatpush1.msra.mxu0 0.0
    %2578 = vmatprep.subr.mxu0 0.0
    %2579 = vmatpush1.msra.mxu0 0.0
    %2580 = vmatprep.subr.mxu0 0.0
    %2581 = vmatpush1.msra.mxu0 0.0
    %2582 = vmatprep.subr.mxu0 0.0
    %2583 = vmatpush1.msra.mxu0 0.0
    %2584 = vmatprep.subr.mxu0 0.0
    %2585 = vmatpush1.msra.mxu0 0.0
    %2586 = vmatprep.subr.mxu0 0.0
    %2587 = vmatpush1.msra.mxu0 0.0
    %2588 = vmatprep.subr.mxu0 0.0
    %2589 = vmatpush1.msra.mxu0 0.0
    %2590 = vmatprep.subr.mxu0 0.0
    %2591 = vmatpush1.msra.mxu0 %v1603
    %2592 = vmatprep.subr.mxu0 0.0
    %2593 = vmatpush1.msra.mxu0 %v1535
    %2594 = vmatprep.subr.mxu0 0.0
    %2595 = vmatpush2.msra.mxu0 0.0
    %2596 = vmatprep.subr.mxu0 0.0
    %2597 = vmatpush2.msra.mxu0 0.0
    %2598 = vmatprep.subr.mxu0 0.0
    %2599 = vmatpush2.msra.mxu0 0.0
    %2600 = vmatprep.subr.mxu0 0.0
    %2601 = vmatpush2.msra.mxu0 0.0
    %2602 = vmatprep.subr.mxu0 0.0
    %2603 = vmatpush2.msra.mxu0 0.0
    %2604 = vmatprep.subr.mxu0 0.0
    %2605 = vmatpush2.msra.mxu0 0.0
    %2606 = vmatprep.subr.mxu0 0.0
    %2607 = vmatpush2.msra.mxu0 0.0
    %2608 = vmatprep.subr.mxu0 0.0
    %2609 = vmatpush2.msra.mxu0 0.0
    %2610 = vmatprep.subr.mxu0 0.0
    %2611 = vmatpush2.msra.mxu0 0.0
    %2612 = vmatprep.subr.mxu0 0.0
    %2613 = vmatpush2.msra.mxu0 0.0
    %2614 = vmatprep.subr.mxu0 0.0
    %2615 = vmatpush2.msra.mxu0 0.0
    %2616 = vmatprep.subr.mxu0 0.0
    %2617 = vmatpush2.msra.mxu0 0.0
    %2618 = vmatprep.subr.mxu0 0.0
    %2619 = vmatpush2.msra.mxu0 0.0
    %2620 = vmatprep.subr.mxu0 0.0
    %2621 = vmatpush2.msra.mxu0 0.0
    %2622 = vmatprep.subr.mxu0 0.0
    %2623 = vmatpush2.msra.mxu0 0.0
    %2624 = vmatprep.subr.mxu0 0.0
    %2625 = vmatpush2.msra.mxu0 0.0
    %2626 = vmatprep.mubr.f32.mxu0 0.0
    %2627 = vmatmul.mubr.f32.gmra.mxu0 %v2560
    %v2628 = vpop.f32.mrf.mxu0
    %v2629 = vadd.f32 0.0, %v2628
    %v2630 = vpop.f32.mrf.mxu0
    %2631 = vdwg.mxu0
    %v2633 = vsel %vm2397, %v2475, 0
    %2635 = vmatprep.subr.mxu0 0.0
    %2636 = vmatpush1.msra.mxu0 0.0
    %2637 = vmatprep.subr.mxu0 0.0
    %2638 = vmatpush1.msra.mxu0 0.0
    %2639 = vmatprep.subr.mxu0 0.0
    %2640 = vmatpush1.msra.mxu0 0.0
    %2641 = vmatprep.subr.mxu0 0.0
    %2642 = vmatpush1.msra.mxu0 0.0
    %2643 = vmatprep.subr.mxu0 0.0
    %2644 = vmatpush1.msra.mxu0 0.0
    %2645 = vmatprep.subr.mxu0 0.0
    %2646 = vmatpush1.msra.mxu0 0.0
    %2647 = vmatprep.subr.mxu0 0.0
    %2648 = vmatpush1.msra.mxu0 0.0
    %2649 = vmatprep.subr.mxu0 0.0
    %2650 = vmatpush1.msra.mxu0 0.0
    %2651 = vmatprep.subr.mxu0 0.0
    %2652 = vmatpush1.msra.mxu0 0.0
    %2653 = vmatprep.subr.mxu0 0.0
    %2654 = vmatpush1.msra.mxu0 0.0
    %2655 = vmatprep.subr.mxu0 0.0
    %2656 = vmatpush1.msra.mxu0 0.0
    %2657 = vmatprep.subr.mxu0 0.0
    %2658 = vmatpush1.msra.mxu0 0.0
    %2659 = vmatprep.subr.mxu0 0.0
    %2660 = vmatpush1.msra.mxu0 0.0
    %2661 = vmatprep.subr.mxu0 0.0
    %2662 = vmatpush1.msra.mxu0 0.0
    %2663 = vmatprep.subr.mxu0 0.0
    %2664 = vmatpush1.msra.mxu0 %v1604
    %2665 = vmatprep.subr.mxu0 0.0
    %2666 = vmatpush1.msra.mxu0 %v1536
    %2667 = vmatprep.subr.mxu0 0.0
    %2668 = vmatpush2.msra.mxu0 0.0
    %2669 = vmatprep.subr.mxu0 0.0
    %2670 = vmatpush2.msra.mxu0 0.0
    %2671 = vmatprep.subr.mxu0 0.0
    %2672 = vmatpush2.msra.mxu0 0.0
    %2673 = vmatprep.subr.mxu0 0.0
    %2674 = vmatpush2.msra.mxu0 0.0
    %2675 = vmatprep.subr.mxu0 0.0
    %2676 = vmatpush2.msra.mxu0 0.0
    %2677 = vmatprep.subr.mxu0 0.0
    %2678 = vmatpush2.msra.mxu0 0.0
    %2679 = vmatprep.subr.mxu0 0.0
    %2680 = vmatpush2.msra.mxu0 0.0
    %2681 = vmatprep.subr.mxu0 0.0
    %2682 = vmatpush2.msra.mxu0 0.0
    %2683 = vmatprep.subr.mxu0 0.0
    %2684 = vmatpush2.msra.mxu0 0.0
    %2685 = vmatprep.subr.mxu0 0.0
    %2686 = vmatpush2.msra.mxu0 0.0
    %2687 = vmatprep.subr.mxu0 0.0
    %2688 = vmatpush2.msra.mxu0 0.0
    %2689 = vmatprep.subr.mxu0 0.0
    %2690 = vmatpush2.msra.mxu0 0.0
    %2691 = vmatprep.subr.mxu0 0.0
    %2692 = vmatpush2.msra.mxu0 0.0
    %2693 = vmatprep.subr.mxu0 0.0
    %2694 = vmatpush2.msra.mxu0 0.0
    %2695 = vmatprep.subr.mxu0 0.0
    %2696 = vmatpush2.msra.mxu0 0.0
    %2697 = vmatprep.subr.mxu0 0.0
    %2698 = vmatpush2.msra.mxu0 0.0
    %2699 = vmatprep.mubr.f32.mxu0 0.0
    %2700 = vmatmul.mubr.f32.gmra.mxu0 %v2633
    %v2701 = vpop.f32.mrf.mxu0
    %v2702 = vadd.f32 0.0, %v2701
    %v2703 = vpop.f32.mrf.mxu0
    %2704 = vdwg.mxu0
    %v2706 = vsel %vm2397, %v2477, 0
    %2708 = vmatprep.subr.mxu0 0.0
    %2709 = vmatpush1.msra.mxu0 0.0
    %2710 = vmatprep.subr.mxu0 0.0
    %2711 = vmatpush1.msra.mxu0 0.0
    %2712 = vmatprep.subr.mxu0 0.0
    %2713 = vmatpush1.msra.mxu0 0.0
    %2714 = vmatprep.subr.mxu0 0.0
    %2715 = vmatpush1.msra.mxu0 0.0
    %2716 = vmatprep.subr.mxu0 0.0
    %2717 = vmatpush1.msra.mxu0 0.0
    %2718 = vmatprep.subr.mxu0 0.0
    %2719 = vmatpush1.msra.mxu0 0.0
    %2720 = vmatprep.subr.mxu0 0.0
    %2721 = vmatpush1.msra.mxu0 0.0
    %2722 = vmatprep.subr.mxu0 0.0
    %2723 = vmatpush1.msra.mxu0 0.0
    %2724 = vmatprep.subr.mxu0 0.0
    %2725 = vmatpush1.msra.mxu0 0.0
    %2726 = vmatprep.subr.mxu0 0.0
    %2727 = vmatpush1.msra.mxu0 0.0
    %2728 = vmatprep.subr.mxu0 0.0
    %2729 = vmatpush1.msra.mxu0 0.0
    %2730 = vmatprep.subr.mxu0 0.0
    %2731 = vmatpush1.msra.mxu0 0.0
    %2732 = vmatprep.subr.mxu0 0.0
    %2733 = vmatpush1.msra.mxu0 0.0
    %2734 = vmatprep.subr.mxu0 0.0
    %2735 = vmatpush1.msra.mxu0 0.0
    %2736 = vmatprep.subr.mxu0 0.0
    %2737 = vmatpush1.msra.mxu0 %v1605
    %2738 = vmatprep.subr.mxu0 0.0
    %2739 = vmatpush1.msra.mxu0 %v1537
    %2740 = vmatprep.subr.mxu0 0.0
    %2741 = vmatpush2.msra.mxu0 0.0
    %2742 = vmatprep.subr.mxu0 0.0
    %2743 = vmatpush2.msra.mxu0 0.0
    %2744 = vmatprep.subr.mxu0 0.0
    %2745 = vmatpush2.msra.mxu0 0.0
    %2746 = vmatprep.subr.mxu0 0.0
    %2747 = vmatpush2.msra.mxu0 0.0
    %2748 = vmatprep.subr.mxu0 0.0
    %2749 = vmatpush2.msra.mxu0 0.0
    %2750 = vmatprep.subr.mxu0 0.0
    %2751 = vmatpush2.msra.mxu0 0.0
    %2752 = vmatprep.subr.mxu0 0.0
    %2753 = vmatpush2.msra.mxu0 0.0
    %2754 = vmatprep.subr.mxu0 0.0
    %2755 = vmatpush2.msra.mxu0 0.0
    %2756 = vmatprep.subr.mxu0 0.0
    %2757 = vmatpush2.msra.mxu0 0.0
    %2758 = vmatprep.subr.mxu0 0.0
    %2759 = vmatpush2.msra.mxu0 0.0
    %2760 = vmatprep.subr.mxu0 0.0
    %2761 = vmatpush2.msra.mxu0 0.0
    %2762 = vmatprep.subr.mxu0 0.0
    %2763 = vmatpush2.msra.mxu0 0.0
    %2764 = vmatprep.subr.mxu0 0.0
    %2765 = vmatpush2.msra.mxu0 0.0
    %2766 = vmatprep.subr.mxu0 0.0
    %2767 = vmatpush2.msra.mxu0 0.0
    %2768 = vmatprep.subr.mxu0 0.0
    %2769 = vmatpush2.msra.mxu0 0.0
    %2770 = vmatprep.subr.mxu0 0.0
    %2771 = vmatpush2.msra.mxu0 0.0
    %2772 = vmatprep.mubr.f32.mxu0 0.0
    %2773 = vmatmul.mubr.f32.gmra.mxu0 %v2706
    %v2774 = vpop.f32.mrf.mxu0
    %v2775 = vadd.f32 0.0, %v2774
    %v2776 = vpop.f32.mrf.mxu0
    %2777 = vdwg.mxu0
    %v2779 = vsel %vm2397, %v2479, 0
    %2781 = vmatprep.subr.mxu0 0.0
    %2782 = vmatpush1.msra.mxu0 0.0
    %2783 = vmatprep.subr.mxu0 0.0
    %2784 = vmatpush1.msra.mxu0 0.0
    %2785 = vmatprep.subr.mxu0 0.0
    %2786 = vmatpush1.msra.mxu0 0.0
    %2787 = vmatprep.subr.mxu0 0.0
    %2788 = vmatpush1.msra.mxu0 0.0
    %2789 = vmatprep.subr.mxu0 0.0
    %2790 = vmatpush1.msra.mxu0 0.0
    %2791 = vmatprep.subr.mxu0 0.0
    %2792 = vmatpush1.msra.mxu0 0.0
    %2793 = vmatprep.subr.mxu0 0.0
    %2794 = vmatpush1.msra.mxu0 0.0
    %2795 = vmatprep.subr.mxu0 0.0
    %2796 = vmatpush1.msra.mxu0 0.0
    %2797 = vmatprep.subr.mxu0 0.0
    %2798 = vmatpush1.msra.mxu0 0.0
    %2799 = vmatprep.subr.mxu0 0.0
    %2800 = vmatpush1.msra.mxu0 0.0
    %2801 = vmatprep.subr.mxu0 0.0
    %2802 = vmatpush1.msra.mxu0 0.0
    %2803 = vmatprep.subr.mxu0 0.0
    %2804 = vmatpush1.msra.mxu0 0.0
    %2805 = vmatprep.subr.mxu0 0.0
    %2806 = vmatpush1.msra.mxu0 0.0
    %2807 = vmatprep.subr.mxu0 0.0
    %2808 = vmatpush1.msra.mxu0 0.0
    %2809 = vmatprep.subr.mxu0 0.0
    %2810 = vmatpush1.msra.mxu0 %v1738
    %2811 = vmatprep.subr.mxu0 0.0
    %2812 = vmatpush1.msra.mxu0 %v1670
    %2813 = vmatprep.subr.mxu0 0.0
    %2814 = vmatpush2.msra.mxu0 0.0
    %2815 = vmatprep.subr.mxu0 0.0
    %2816 = vmatpush2.msra.mxu0 0.0
    %2817 = vmatprep.subr.mxu0 0.0
    %2818 = vmatpush2.msra.mxu0 0.0
    %2819 = vmatprep.subr.mxu0 0.0
    %2820 = vmatpush2.msra.mxu0 0.0
    %2821 = vmatprep.subr.mxu0 0.0
    %2822 = vmatpush2.msra.mxu0 0.0
    %2823 = vmatprep.subr.mxu0 0.0
    %2824 = vmatpush2.msra.mxu0 0.0
    %2825 = vmatprep.subr.mxu0 0.0
    %2826 = vmatpush2.msra.mxu0 0.0
    %2827 = vmatprep.subr.mxu0 0.0
    %2828 = vmatpush2.msra.mxu0 0.0
    %2829 = vmatprep.subr.mxu0 0.0
    %2830 = vmatpush2.msra.mxu0 0.0
    %2831 = vmatprep.subr.mxu0 0.0
    %2832 = vmatpush2.msra.mxu0 0.0
    %2833 = vmatprep.subr.mxu0 0.0
    %2834 = vmatpush2.msra.mxu0 0.0
    %2835 = vmatprep.subr.mxu0 0.0
    %2836 = vmatpush2.msra.mxu0 0.0
    %2837 = vmatprep.subr.mxu0 0.0
    %2838 = vmatpush2.msra.mxu0 0.0
    %2839 = vmatprep.subr.mxu0 0.0
    %2840 = vmatpush2.msra.mxu0 0.0
    %2841 = vmatprep.subr.mxu0 0.0
    %2842 = vmatpush2.msra.mxu0 0.0
    %2843 = vmatprep.subr.mxu0 0.0
    %2844 = vmatpush2.msra.mxu0 0.0
    %2845 = vmatprep.mubr.f32.mxu0 0.0
    %2846 = vmatmul.mubr.f32.gmra.mxu0 %v2779
    %v2847 = vpop.f32.mrf.mxu0
    %v2848 = vadd.f32 0.0, %v2847
    %v2849 = vpop.f32.mrf.mxu0
    %2850 = vdwg.mxu0
    %v2852 = vsel %vm2397, %v2481, 0
    %2854 = vmatprep.subr.mxu0 0.0
    %2855 = vmatpush1.msra.mxu0 0.0
    %2856 = vmatprep.subr.mxu0 0.0
    %2857 = vmatpush1.msra.mxu0 0.0
    %2858 = vmatprep.subr.mxu0 0.0
    %2859 = vmatpush1.msra.mxu0 0.0
    %2860 = vmatprep.subr.mxu0 0.0
    %2861 = vmatpush1.msra.mxu0 0.0
    %2862 = vmatprep.subr.mxu0 0.0
    %2863 = vmatpush1.msra.mxu0 0.0
    %2864 = vmatprep.subr.mxu0 0.0
    %2865 = vmatpush1.msra.mxu0 0.0
    %2866 = vmatprep.subr.mxu0 0.0
    %2867 = vmatpush1.msra.mxu0 0.0
    %2868 = vmatprep.subr.mxu0 0.0
    %2869 = vmatpush1.msra.mxu0 0.0
    %2870 = vmatprep.subr.mxu0 0.0
    %2871 = vmatpush1.msra.mxu0 0.0
    %2872 = vmatprep.subr.mxu0 0.0
    %2873 = vmatpush1.msra.mxu0 0.0
    %2874 = vmatprep.subr.mxu0 0.0
    %2875 = vmatpush1.msra.mxu0 0.0
    %2876 = vmatprep.subr.mxu0 0.0
    %2877 = vmatpush1.msra.mxu0 0.0
    %2878 = vmatprep.subr.mxu0 0.0
    %2879 = vmatpush1.msra.mxu0 0.0
    %2880 = vmatprep.subr.mxu0 0.0
    %2881 = vmatpush1.msra.mxu0 0.0
    %2882 = vmatprep.subr.mxu0 0.0
    %2883 = vmatpush1.msra.mxu0 %v1739
    %2884 = vmatprep.subr.mxu0 0.0
    %2885 = vmatpush1.msra.mxu0 %v1671
    %2886 = vmatprep.subr.mxu0 0.0
    %2887 = vmatpush2.msra.mxu0 0.0
    %2888 = vmatprep.subr.mxu0 0.0
    %2889 = vmatpush2.msra.mxu0 0.0
    %2890 = vmatprep.subr.mxu0 0.0
    %2891 = vmatpush2.msra.mxu0 0.0
    %2892 = vmatprep.subr.mxu0 0.0
    %2893 = vmatpush2.msra.mxu0 0.0
    %2894 = vmatprep.subr.mxu0 0.0
    %2895 = vmatpush2.msra.mxu0 0.0
    %2896 = vmatprep.subr.mxu0 0.0
    %2897 = vmatpush2.msra.mxu0 0.0
    %2898 = vmatprep.subr.mxu0 0.0
    %2899 = vmatpush2.msra.mxu0 0.0
    %2900 = vmatprep.subr.mxu0 0.0
    %2901 = vmatpush2.msra.mxu0 0.0
    %2902 = vmatprep.subr.mxu0 0.0
    %2903 = vmatpush2.msra.mxu0 0.0
    %2904 = vmatprep.subr.mxu0 0.0
    %2905 = vmatpush2.msra.mxu0 0.0
    %2906 = vmatprep.subr.mxu0 0.0
    %2907 = vmatpush2.msra.mxu0 0.0
    %2908 = vmatprep.subr.mxu0 0.0
    %2909 = vmatpush2.msra.mxu0 0.0
    %2910 = vmatprep.subr.mxu0 0.0
    %2911 = vmatpush2.msra.mxu0 0.0
    %2912 = vmatprep.subr.mxu0 0.0
    %2913 = vmatpush2.msra.mxu0 0.0
    %2914 = vmatprep.subr.mxu0 0.0
    %2915 = vmatpush2.msra.mxu0 0.0
    %2916 = vmatprep.subr.mxu0 0.0
    %2917 = vmatpush2.msra.mxu0 0.0
    %2918 = vmatprep.mubr.f32.mxu0 0.0
    %2919 = vmatmul.mubr.f32.gmra.mxu0 %v2852
    %v2920 = vpop.f32.mrf.mxu0
    %v2921 = vadd.f32 0.0, %v2920
    %v2922 = vpop.f32.mrf.mxu0
    %2923 = vdwg.mxu0
    %v2925 = vsel %vm2397, %v2483, 0
    %2927 = vmatprep.subr.mxu0 0.0
    %2928 = vmatpush1.msra.mxu0 0.0
    %2929 = vmatprep.subr.mxu0 0.0
    %2930 = vmatpush1.msra.mxu0 0.0
    %2931 = vmatprep.subr.mxu0 0.0
    %2932 = vmatpush1.msra.mxu0 0.0
    %2933 = vmatprep.subr.mxu0 0.0
    %2934 = vmatpush1.msra.mxu0 0.0
    %2935 = vmatprep.subr.mxu0 0.0
    %2936 = vmatpush1.msra.mxu0 0.0
    %2937 = vmatprep.subr.mxu0 0.0
    %2938 = vmatpush1.msra.mxu0 0.0
    %2939 = vmatprep.subr.mxu0 0.0
    %2940 = vmatpush1.msra.mxu0 0.0
    %2941 = vmatprep.subr.mxu0 0.0
    %2942 = vmatpush1.msra.mxu0 0.0
    %2943 = vmatprep.subr.mxu0 0.0
    %2944 = vmatpush1.msra.mxu0 0.0
    %2945 = vmatprep.subr.mxu0 0.0
    %2946 = vmatpush1.msra.mxu0 0.0
    %2947 = vmatprep.subr.mxu0 0.0
    %2948 = vmatpush1.msra.mxu0 0.0
    %2949 = vmatprep.subr.mxu0 0.0
    %2950 = vmatpush1.msra.mxu0 0.0
    %2951 = vmatprep.subr.mxu0 0.0
    %2952 = vmatpush1.msra.mxu0 0.0
    %2953 = vmatprep.subr.mxu0 0.0
    %2954 = vmatpush1.msra.mxu0 0.0
    %2955 = vmatprep.subr.mxu0 0.0
    %2956 = vmatpush1.msra.mxu0 %v1740
    %2957 = vmatprep.subr.mxu0 0.0
    %2958 = vmatpush1.msra.mxu0 %v1672
    %2959 = vmatprep.subr.mxu0 0.0
    %2960 = vmatpush2.msra.mxu0 0.0
    %2961 = vmatprep.subr.mxu0 0.0
    %2962 = vmatpush2.msra.mxu0 0.0
    %2963 = vmatprep.subr.mxu0 0.0
    %2964 = vmatpush2.msra.mxu0 0.0
    %2965 = vmatprep.subr.mxu0 0.0
    %2966 = vmatpush2.msra.mxu0 0.0
    %2967 = vmatprep.subr.mxu0 0.0
    %2968 = vmatpush2.msra.mxu0 0.0
    %2969 = vmatprep.subr.mxu0 0.0
    %2970 = vmatpush2.msra.mxu0 0.0
    %2971 = vmatprep.subr.mxu0 0.0
    %2972 = vmatpush2.msra.mxu0 0.0
    %2973 = vmatprep.subr.mxu0 0.0
    %2974 = vmatpush2.msra.mxu0 0.0
    %2975 = vmatprep.subr.mxu0 0.0
    %2976 = vmatpush2.msra.mxu0 0.0
    %2977 = vmatprep.subr.mxu0 0.0
    %2978 = vmatpush2.msra.mxu0 0.0
    %2979 = vmatprep.subr.mxu0 0.0
    %2980 = vmatpush2.msra.mxu0 0.0
    %2981 = vmatprep.subr.mxu0 0.0
    %2982 = vmatpush2.msra.mxu0 0.0
    %2983 = vmatprep.subr.mxu0 0.0
    %2984 = vmatpush2.msra.mxu0 0.0
    %2985 = vmatprep.subr.mxu0 0.0
    %2986 = vmatpush2.msra.mxu0 0.0
    %2987 = vmatprep.subr.mxu0 0.0
    %2988 = vmatpush2.msra.mxu0 0.0
    %2989 = vmatprep.subr.mxu0 0.0
    %2990 = vmatpush2.msra.mxu0 0.0
    %2991 = vmatprep.mubr.f32.mxu0 0.0
    %2992 = vmatmul.mubr.f32.gmra.mxu0 %v2925
    %v2993 = vpop.f32.mrf.mxu0
    %v2994 = vadd.f32 0.0, %v2993
    %v2995 = vpop.f32.mrf.mxu0
    %2996 = vdwg.mxu0
    %v2998 = vsel %vm2397, %v2485, 0
    %3000 = vmatprep.subr.mxu0 0.0
    %3001 = vmatpush1.msra.mxu0 0.0
    %3002 = vmatprep.subr.mxu0 0.0
    %3003 = vmatpush1.msra.mxu0 0.0
    %3004 = vmatprep.subr.mxu0 0.0
    %3005 = vmatpush1.msra.mxu0 0.0
    %3006 = vmatprep.subr.mxu0 0.0
    %3007 = vmatpush1.msra.mxu0 0.0
    %3008 = vmatprep.subr.mxu0 0.0
    %3009 = vmatpush1.msra.mxu0 0.0
    %3010 = vmatprep.subr.mxu0 0.0
    %3011 = vmatpush1.msra.mxu0 0.0
    %3012 = vmatprep.subr.mxu0 0.0
    %3013 = vmatpush1.msra.mxu0 0.0
    %3014 = vmatprep.subr.mxu0 0.0
    %3015 = vmatpush1.msra.mxu0 0.0
    %3016 = vmatprep.subr.mxu0 0.0
    %3017 = vmatpush1.msra.mxu0 0.0
    %3018 = vmatprep.subr.mxu0 0.0
    %3019 = vmatpush1.msra.mxu0 0.0
    %3020 = vmatprep.subr.mxu0 0.0
    %3021 = vmatpush1.msra.mxu0 0.0
    %3022 = vmatprep.subr.mxu0 0.0
    %3023 = vmatpush1.msra.mxu0 0.0
    %3024 = vmatprep.subr.mxu0 0.0
    %3025 = vmatpush1.msra.mxu0 0.0
    %3026 = vmatprep.subr.mxu0 0.0
    %3027 = vmatpush1.msra.mxu0 0.0
    %3028 = vmatprep.subr.mxu0 0.0
    %3029 = vmatpush1.msra.mxu0 %v1741
    %3030 = vmatprep.subr.mxu0 0.0
    %3031 = vmatpush1.msra.mxu0 %v1673
    %3032 = vmatprep.subr.mxu0 0.0
    %3033 = vmatpush2.msra.mxu0 0.0
    %3034 = vmatprep.subr.mxu0 0.0
    %3035 = vmatpush2.msra.mxu0 0.0
    %3036 = vmatprep.subr.mxu0 0.0
    %3037 = vmatpush2.msra.mxu0 0.0
    %3038 = vmatprep.subr.mxu0 0.0
    %3039 = vmatpush2.msra.mxu0 0.0
    %3040 = vmatprep.subr.mxu0 0.0
    %3041 = vmatpush2.msra.mxu0 0.0
    %3042 = vmatprep.subr.mxu0 0.0
    %3043 = vmatpush2.msra.mxu0 0.0
    %3044 = vmatprep.subr.mxu0 0.0
    %3045 = vmatpush2.msra.mxu0 0.0
    %3046 = vmatprep.subr.mxu0 0.0
    %3047 = vmatpush2.msra.mxu0 0.0
    %3048 = vmatprep.subr.mxu0 0.0
    %3049 = vmatpush2.msra.mxu0 0.0
    %3050 = vmatprep.subr.mxu0 0.0
    %3051 = vmatpush2.msra.mxu0 0.0
    %3052 = vmatprep.subr.mxu0 0.0
    %3053 = vmatpush2.msra.mxu0 0.0
    %3054 = vmatprep.subr.mxu0 0.0
    %3055 = vmatpush2.msra.mxu0 0.0
    %3056 = vmatprep.subr.mxu0 0.0
    %3057 = vmatpush2.msra.mxu0 0.0
    %3058 = vmatprep.subr.mxu0 0.0
    %3059 = vmatpush2.msra.mxu0 0.0
    %3060 = vmatprep.subr.mxu0 0.0
    %3061 = vmatpush2.msra.mxu0 0.0
    %3062 = vmatprep.subr.mxu0 0.0
    %3063 = vmatpush2.msra.mxu0 0.0
    %3064 = vmatprep.mubr.f32.mxu0 0.0
    %3065 = vmatmul.mubr.f32.gmra.mxu0 %v2998
    %v3066 = vpop.f32.mrf.mxu0
    %v3067 = vadd.f32 0.0, %v3066
    %v3068 = vpop.f32.mrf.mxu0
    %3069 = vdwg.mxu0
    %v3070 = vcombine.low %v2556, %v2702
    %v3071 = vcombine.high %v2556, %v2702
    %v3073 = vunpack.c.l.s4 1983009808
    %v3074 = vunpack.c.0.s8 %v3073
    %v3075 = vlaneseq
    %v3076 = vshrl.u32 %v3075, 7
    %v3077 = vsub.s32 %v3074, %v3076
    %v3078 = vrot.slane %v3070, %v3077
    %v3080 = vunpack.c.l.s4 1983009808
    %v3081 = vunpack.c.0.s8 %v3080
    %v3082 = vlaneseq
    %v3083 = vshrl.u32 %v3082, 7
    %v3084 = vsub.s32 %v3081, %v3083
    %v3085 = vrot.slane %v3071, %v3084
    %v3086 = vcombine.low %v2629, %v2775
    %v3087 = vcombine.high %v2629, %v2775
    %v3089 = vunpack.c.l.s4 1983009808
    %v3090 = vunpack.c.0.s8 %v3089
    %v3091 = vlaneseq
    %v3092 = vshrl.u32 %v3091, 7
    %v3093 = vsub.s32 %v3090, %v3092
    %v3094 = vrot.slane %v3086, %v3093
    %v3096 = vunpack.c.l.s4 1983009808
    %v3097 = vunpack.c.0.s8 %v3096
    %v3098 = vlaneseq
    %v3099 = vshrl.u32 %v3098, 7
    %v3100 = vsub.s32 %v3097, %v3099
    %v3101 = vrot.slane %v3087, %v3100
    %v3102 = vcombine.low %v3078, %v3094
    %v3103 = vcombine.high %v3078, %v3094
    %v3105 = vunpack.c.l.s4 1934713408
    %v3106 = vunpack.c.0.s8 %v3105
    %v3107 = vlaneseq
    %v3108 = vshrl.u32 %v3107, 7
    %v3109 = vsub.s32 %v3106, %v3108
    %v3110 = vrot.slane %v3102, %v3109
    %v3112 = vunpack.c.l.s4 1934713408
    %v3113 = vunpack.c.0.s8 %v3112
    %v3114 = vlaneseq
    %v3115 = vshrl.u32 %v3114, 7
    %v3116 = vsub.s32 %v3113, %v3115
    %v3117 = vrot.slane %v3103, %v3116
    %v3118 = vcombine.low %v3085, %v3101
    %v3119 = vcombine.high %v3085, %v3101
    %v3121 = vunpack.c.l.s4 1934713408
    %v3122 = vunpack.c.0.s8 %v3121
    %v3123 = vlaneseq
    %v3124 = vshrl.u32 %v3123, 7
    %v3125 = vsub.s32 %v3122, %v3124
    %v3126 = vrot.slane %v3118, %v3125
    %v3128 = vunpack.c.l.s4 1934713408
    %v3129 = vunpack.c.0.s8 %v3128
    %v3130 = vlaneseq
    %v3131 = vshrl.u32 %v3130, 7
    %v3132 = vsub.s32 %v3129, %v3131
    %v3133 = vrot.slane %v3119, %v3132
    %v3134 = vcombine.high %v3110, 0.0
    %v3135 = vcombine.high %v3117, 0.0
    %v3136 = vcombine.high %v3126, 0.0
    %v3137 = vcombine.high %v3133, 0.0
    %v3138 = vcombine.low %v2848, %v2994
    %v3139 = vcombine.high %v2848, %v2994
    %v3141 = vunpack.c.l.s4 1983009808
    %v3142 = vunpack.c.0.s8 %v3141
    %v3143 = vlaneseq
    %v3144 = vshrl.u32 %v3143, 7
    %v3145 = vsub.s32 %v3142, %v3144
    %v3146 = vrot.slane %v3138, %v3145
    %v3148 = vunpack.c.l.s4 1983009808
    %v3149 = vunpack.c.0.s8 %v3148
    %v3150 = vlaneseq
    %v3151 = vshrl.u32 %v3150, 7
    %v3152 = vsub.s32 %v3149, %v3151
    %v3153 = vrot.slane %v3139, %v3152
    %v3154 = vcombine.low %v2921, %v3067
    %v3155 = vcombine.high %v2921, %v3067
    %v3157 = vunpack.c.l.s4 1983009808
    %v3158 = vunpack.c.0.s8 %v3157
    %v3159 = vlaneseq
    %v3160 = vshrl.u32 %v3159, 7
    %v3161 = vsub.s32 %v3158, %v3160
    %v3162 = vrot.slane %v3154, %v3161
    %v3164 = vunpack.c.l.s4 1983009808
    %v3165 = vunpack.c.0.s8 %v3164
    %v3166 = vlaneseq
    %v3167 = vshrl.u32 %v3166, 7
    %v3168 = vsub.s32 %v3165, %v3167
    %v3169 = vrot.slane %v3155, %v3168
    %v3170 = vcombine.low %v3146, %v3162
    %v3171 = vcombine.high %v3146, %v3162
    %v3173 = vunpack.c.l.s4 1934713408
    %v3174 = vunpack.c.0.s8 %v3173
    %v3175 = vlaneseq
    %v3176 = vshrl.u32 %v3175, 7
    %v3177 = vsub.s32 %v3174, %v3176
    %v3178 = vrot.slane %v3170, %v3177
    %v3180 = vunpack.c.l.s4 1934713408
    %v3181 = vunpack.c.0.s8 %v3180
    %v3182 = vlaneseq
    %v3183 = vshrl.u32 %v3182, 7
    %v3184 = vsub.s32 %v3181, %v3183
    %v3185 = vrot.slane %v3171, %v3184
    %v3186 = vcombine.low %v3153, %v3169
    %v3187 = vcombine.high %v3153, %v3169
    %v3189 = vunpack.c.l.s4 1934713408
    %v3190 = vunpack.c.0.s8 %v3189
    %v3191 = vlaneseq
    %v3192 = vshrl.u32 %v3191, 7
    %v3193 = vsub.s32 %v3190, %v3192
    %v3194 = vrot.slane %v3186, %v3193
    %v3196 = vunpack.c.l.s4 1934713408
    %v3197 = vunpack.c.0.s8 %v3196
    %v3198 = vlaneseq
    %v3199 = vshrl.u32 %v3198, 7
    %v3200 = vsub.s32 %v3197, %v3199
    %v3201 = vrot.slane %v3187, %v3200
    %v3202 = vcombine.high %v3178, 0.0
    %v3203 = vcombine.high %v3185, 0.0
    %v3204 = vcombine.high %v3194, 0.0
    %v3205 = vcombine.high %v3201, 0.0
    %v3206 = vcombine.low %v3110, %v3117
    %v3208 = vunpack.c.l.s4 1983009808
    %v3209 = vunpack.c.0.s8 %v3208
    %v3210 = vlaneseq
    %v3211 = vshrl.u32 %v3210, 7
    %v3212 = vsub.s32 %v3209, %v3211
    %v3213 = vrot.slane %v3206, %v3212
    %v3214 = vcombine.low %v3134, %v3135
    %v3216 = vunpack.c.l.s4 1983009808
    %v3217 = vunpack.c.0.s8 %v3216
    %v3218 = vlaneseq
    %v3219 = vshrl.u32 %v3218, 7
    %v3220 = vsub.s32 %v3217, %v3219
    %v3221 = vrot.slane %v3214, %v3220
    %v3222 = vcombine.low %v3126, %v3133
    %v3224 = vunpack.c.l.s4 1983009808
    %v3225 = vunpack.c.0.s8 %v3224
    %v3226 = vlaneseq
    %v3227 = vshrl.u32 %v3226, 7
    %v3228 = vsub.s32 %v3225, %v3227
    %v3229 = vrot.slane %v3222, %v3228
    %v3230 = vcombine.low %v3136, %v3137
    %v3232 = vunpack.c.l.s4 1983009808
    %v3233 = vunpack.c.0.s8 %v3232
    %v3234 = vlaneseq
    %v3235 = vshrl.u32 %v3234, 7
    %v3236 = vsub.s32 %v3233, %v3235
    %v3237 = vrot.slane %v3230, %v3236
    %v3238 = vcombine.low %v3213, %v3221
    %v3239 = vcombine.high %v3213, %v3221
    %v3241 = vunpack.c.l.s4 1934713408
    %v3242 = vunpack.c.0.s8 %v3241
    %v3243 = vlaneseq
    %v3244 = vshrl.u32 %v3243, 7
    %v3245 = vsub.s32 %v3242, %v3244
    %v3246 = vrot.slane %v3238, %v3245
    %v3248 = vunpack.c.l.s4 1934713408
    %v3249 = vunpack.c.0.s8 %v3248
    %v3250 = vlaneseq
    %v3251 = vshrl.u32 %v3250, 7
    %v3252 = vsub.s32 %v3249, %v3251
    %v3253 = vrot.slane %v3239, %v3252
    %v3254 = vcombine.low %v3229, %v3237
    %v3255 = vcombine.high %v3229, %v3237
    %v3257 = vunpack.c.l.s4 1934713408
    %v3258 = vunpack.c.0.s8 %v3257
    %v3259 = vlaneseq
    %v3260 = vshrl.u32 %v3259, 7
    %v3261 = vsub.s32 %v3258, %v3260
    %v3262 = vrot.slane %v3254, %v3261
    %v3264 = vunpack.c.l.s4 1934713408
    %v3265 = vunpack.c.0.s8 %v3264
    %v3266 = vlaneseq
    %v3267 = vshrl.u32 %v3266, 7
    %v3268 = vsub.s32 %v3265, %v3267
    %v3269 = vrot.slane %v3255, %v3268
    %v3270 = vcombine.low %v3246, %v3262
    %v3271 = vcombine.high %v3246, %v3262
    %v3272 = vcombine.low %v3253, %v3269
    %v3273 = vcombine.high %v3253, %v3269
    %v3274 = vcombine.low %v3178, %v3185
    %v3276 = vunpack.c.l.s4 1983009808
    %v3277 = vunpack.c.0.s8 %v3276
    %v3278 = vlaneseq
    %v3279 = vshrl.u32 %v3278, 7
    %v3280 = vsub.s32 %v3277, %v3279
    %v3281 = vrot.slane %v3274, %v3280
    %v3282 = vcombine.low %v3202, %v3203
    %v3284 = vunpack.c.l.s4 1983009808
    %v3285 = vunpack.c.0.s8 %v3284
    %v3286 = vlaneseq
    %v3287 = vshrl.u32 %v3286, 7
    %v3288 = vsub.s32 %v3285, %v3287
    %v3289 = vrot.slane %v3282, %v3288
    %v3290 = vcombine.low %v3194, %v3201
    %v3292 = vunpack.c.l.s4 1983009808
    %v3293 = vunpack.c.0.s8 %v3292
    %v3294 = vlaneseq
    %v3295 = vshrl.u32 %v3294, 7
    %v3296 = vsub.s32 %v3293, %v3295
    %v3297 = vrot.slane %v3290, %v3296
    %v3298 = vcombine.low %v3204, %v3205
    %v3300 = vunpack.c.l.s4 1983009808
    %v3301 = vunpack.c.0.s8 %v3300
    %v3302 = vlaneseq
    %v3303 = vshrl.u32 %v3302, 7
    %v3304 = vsub.s32 %v3301, %v3303
    %v3305 = vrot.slane %v3298, %v3304
    %v3306 = vcombine.low %v3281, %v3289
    %v3307 = vcombine.high %v3281, %v3289
    %v3309 = vunpack.c.l.s4 1934713408
    %v3310 = vunpack.c.0.s8 %v3309
    %v3311 = vlaneseq
    %v3312 = vshrl.u32 %v3311, 7
    %v3313 = vsub.s32 %v3310, %v3312
    %v3314 = vrot.slane %v3306, %v3313
    %v3316 = vunpack.c.l.s4 1934713408
    %v3317 = vunpack.c.0.s8 %v3316
    %v3318 = vlaneseq
    %v3319 = vshrl.u32 %v3318, 7
    %v3320 = vsub.s32 %v3317, %v3319
    %v3321 = vrot.slane %v3307, %v3320
    %v3322 = vcombine.low %v3297, %v3305
    %v3323 = vcombine.high %v3297, %v3305
    %v3325 = vunpack.c.l.s4 1934713408
    %v3326 = vunpack.c.0.s8 %v3325
    %v3327 = vlaneseq
    %v3328 = vshrl.u32 %v3327, 7
    %v3329 = vsub.s32 %v3326, %v3328
    %v3330 = vrot.slane %v3322, %v3329
    %v3332 = vunpack.c.l.s4 1934713408
    %v3333 = vunpack.c.0.s8 %v3332
    %v3334 = vlaneseq
    %v3335 = vshrl.u32 %v3334, 7
    %v3336 = vsub.s32 %v3333, %v3335
    %v3337 = vrot.slane %v3323, %v3336
    %v3338 = vcombine.low %v3314, %v3330
    %v3339 = vcombine.high %v3314, %v3330
    %v3340 = vcombine.low %v3321, %v3337
    %v3341 = vcombine.high %v3321, %v3337
    %3344 = vrot.lane.b32.xlu0 %v3271, 8
    %v3345 = vpop.permute.xlu0 %3344
    %3346 = vrot.lane.b32.xlu0 %v3339, 8
    %v3347 = vpop.permute.xlu0 %3346
    %3352 = vrot.lane.b32.xlu0 %v3272, 16
    %v3353 = vpop.permute.xlu0 %3352
    %3354 = vrot.lane.b32.xlu0 %v3340, 16
    %v3355 = vpop.permute.xlu0 %3354
    %3360 = vrot.lane.b32.xlu0 %v3273, 24
    %v3361 = vpop.permute.xlu0 %3360
    %3362 = vrot.lane.b32.xlu0 %v3341, 24
    %v3363 = vpop.permute.xlu0 %3362
    %v3366 = vsel %vm1742, %v3270, %v3345
    %v3367 = vsel %vm1742, %v3338, %v3347
    %v3368 = vsel %vm2397, %v3366, %v3353
    %v3369 = vsel %vm2397, %v3367, %v3355
    %vm3370 = vcmask 195584
    %v3371 = vsel %vm3370, %v3368, %v3361
    %v3372 = vsel %vm3370, %v3369, %v3363
    %3373 = vst.msk [vmem:[#allocation2] sm:$0xff] %vm44, %v3371
    %3374 = vst.msk [vmem:[#allocation2 + $0x8] sm:$0xff] %vm44, %v3372
    // Predicated region
    $region30: #{tpu_custom_call.1} parent=1 // pred_check
      _
    $region31: #{tpu_custom_call.1} parent=1 // pred_check_branch
      %3376 = sbr.rel (0) target = $region33
    $region32: #{tpu_custom_call.1} parent=1 // pred_region
      %s3378 = ssub.s32 256, 256
      %3379 = vsyncadd [#allocation3], %s3378
      %s3380 = sshll.u32 [#allocation2], 4
      %s3381 = int_to_ptr.vmem [resolvable:$true] %s3380
      %3386 = dma.vmem_to_hbm [thread:$0]  %s3381, 256, %s7, [#allocation3], 128, 128, 8
    $region33: #{tpu_custom_call.1} parent=1 // pred_fallthru
      _
    // Predicated region
    $region34: #{tpu_custom_call.1} parent=1 // pred_check
      _
    $region35: #{tpu_custom_call.1} parent=1 // pred_check_branch
      %3388 = sbr.rel (0) target = $region37
    $region36: #{tpu_custom_call.1} parent=1 // pred_region
      %3389 = dma.done [#allocation3], 256
    $region37: #{tpu_custom_call.1} parent=1 // pred_fallthru
      _
    %3390 = vsyncpa [#allocation3], 1

</llo_original>
